<compile_context>
chip_gen: v7x
topology: tpu7x:2x2x1
jax: 0.10.0
libtpu: 0.0.40
codegen_flags: <defaults>
</compile_context>

<pallas_src>
import functools

import jax
import jax.numpy as jnp
from jax.experimental import pallas as pl
from jax.experimental.pallas import tpu as pltpu

X_DIM = 2
T_DIM = 2
N_T = 4
HIDDEN = 128
NEG_SLOPE = 0.2


def _leaky_relu(x, neg_slope=NEG_SLOPE):
    return jnp.where(x > 0, x, neg_slope * x)


def _round_up(x, m):
    return (x + m - 1) // m * m


def disc_kernel(xt_ref, xp_ref, t_ref,
                l1_ref, w2_ref, w3_ref, misc_ref, b4_ref,
                o_ref):
    """One TB-row batch tile of the full 4-layer MLP.

    l1_ref   : (8, 128) f32   rows 0..1 = W1 rows for x_t,
                              rows 2..3 = W1 rows for x_tp1,
                              rows 4..7 = emb @ W1_t + b1   (t-table)
    w2_ref   : (128, 128) bf16
    w3_ref   : (128, 128) bf16
    misc_ref : (3, 128) f32   row 0 = b2, row 1 = b3, row 2 = w4 (as a row)
    b4_ref   : (1, 1)   f32
    """
    # ---- layer 1: K = 6 is tiny -> VPU broadcast FMAs, no MXU tile.
    xt = xt_ref[...]                                   # (TB, 2) f32
    xp = xp_ref[...]                                   # (TB, 2) f32
    l1 = l1_ref[...]                                   # (8, 128) f32

    h = xt[:, 0:1] * l1[0:1, :]
    for j in range(1, X_DIM):
        h = h + xt[:, j:j + 1] * l1[j:j + 1, :]
    for j in range(X_DIM):
        h = h + xp[:, j:j + 1] * l1[X_DIM + j:X_DIM + j + 1, :]

    # t-embedding contribution (b1 folded into the table): n_t = 4 selects.
    t_col = t_ref[...]                                 # (TB, 1) int32
    base = 2 * X_DIM
    for k in range(N_T):
        h = h + jnp.where(t_col == k, l1[base + k:base + k + 1, :], 0.0)
    h = _leaky_relu(h)                                 # (TB, 128) f32

    # ---- layers 2, 3: 128x128 MXU matmuls, bf16 operands, f32 accumulation.
    misc = misc_ref[...]                               # (3, 128) f32
    h = jnp.dot(h.astype(jnp.bfloat16), w2_ref[...],
                preferred_element_type=jnp.float32)
    h = _leaky_relu(h + misc[0:1, :])
    h = jnp.dot(h.astype(jnp.bfloat16), w3_ref[...],
                preferred_element_type=jnp.float32)
    h = _leaky_relu(h + misc[1:2, :])

    # ---- layer 4 (128 -> 1): lane reduction, (TB, 1) column store.
    out = jnp.sum(h * misc[2:3, :], axis=-1, keepdims=True)   # (TB, 1) f32
    o_ref[...] = out + b4_ref[...]


def init_params(key):
    """Deterministic parameter init (same shapes/distributions as PyTorch)."""
    dims = [2 * X_DIM + T_DIM, HIDDEN, HIDDEN, HIDDEN, 1]      # [6,128,128,128,1]
    params = {}
    key, ek = jax.random.split(key)
    params["emb"] = jax.random.normal(ek, (N_T, T_DIM), jnp.float32)
    for i, (din, dout) in enumerate(zip(dims[:-1], dims[1:])):
        key, wk, bk = jax.random.split(key, 3)
        bound = float(din) ** -0.5
        params[f"w{i + 1}"] = jax.random.uniform(
            wk, (din, dout), jnp.float32, -bound, bound)
        params[f"b{i + 1}"] = jax.random.uniform(
            bk, (1, dout), jnp.float32, -bound, bound)
    return params


@functools.partial(jax.jit, static_argnames=("block_b",))
def discriminator_forward(params, x_t, t, x_tp1, block_b=1024):
    B = x_t.shape[0]
    TB = min(block_b, _round_up(B, 128))               # batch tile (mult. of 128)
    B_pad = _round_up(B, TB)
    num_tiles = B_pad // TB
    pad = B_pad - B

    x_t_p = jnp.pad(x_t.astype(jnp.float32), ((0, pad), (0, 0)))
    x_tp1_p = jnp.pad(x_tp1.astype(jnp.float32), ((0, pad), (0, 0)))
    t_p = jnp.pad(t.astype(jnp.int32), (0, pad)).reshape(B_pad, 1)

    # Pack layer-1 parameters into one (8, 128) table (exactly one vreg tile):
    #   rows 0..1  W1 rows multiplying x_t
    #   rows 2..3  W1 rows multiplying x_tp1
    #   rows 4..7  emb @ W1_t + b1     (embedding folded into layer 1)
    w1 = params["w1"]
    l1_tab = jnp.concatenate([
        w1[0:X_DIM, :],
        w1[X_DIM + T_DIM:, :],
        params["emb"] @ w1[X_DIM:X_DIM + T_DIM, :] + params["b1"],
    ], axis=0)                                          # (8, 128) f32

    w2 = params["w2"].astype(jnp.bfloat16)              # (128, 128) bf16
    w3 = params["w3"].astype(jnp.bfloat16)              # (128, 128) bf16
    misc = jnp.concatenate([params["b2"], params["b3"],
                            params["w4"].reshape(1, HIDDEN)], axis=0)  # (3, 128)
    b4 = params["b4"].reshape(1, 1)

    const = lambda i: (0, 0)
    row = lambda i: (i, 0)

    out = pl.pallas_call(
        disc_kernel,
        out_shape=jax.ShapeDtypeStruct((B_pad, 1), jnp.float32),
        grid=(num_tiles,),
        in_specs=[
            pl.BlockSpec((TB, X_DIM), row),              # x_t tile
            pl.BlockSpec((TB, X_DIM), row),              # x_tp1 tile
            pl.BlockSpec((TB, 1), row),                  # t tile (int32)
            pl.BlockSpec((2 * X_DIM + N_T, HIDDEN), const),   # packed layer-1 table
            pl.BlockSpec((HIDDEN, HIDDEN), const),       # w2 (bf16)
            pl.BlockSpec((HIDDEN, HIDDEN), const),       # w3 (bf16)
            pl.BlockSpec((3, HIDDEN), const),            # b2 / b3 / w4 rows
            pl.BlockSpec((1, 1), const),                 # b4
        ],
        out_specs=pl.BlockSpec((TB, 1), row),
        compiler_params=pltpu.CompilerParams(
            dimension_semantics=("parallel",)),
    )(x_t_p, x_tp1_p, t_p, l1_tab, w2, w3, misc, b4)

    # torch .squeeze(): (B, 1) -> (B,) (and () for B == 1).
    return jnp.squeeze(out[:B, 0])


if __name__ == "__main__":
    key = jax.random.PRNGKey(0)
    pkey, k1, k2, k3 = jax.random.split(key, 4)

    params = init_params(pkey)

    B = 8
    x_t = jax.random.normal(k1, (B, X_DIM), jnp.float32)
    x_tp1 = jax.random.normal(k2, (B, X_DIM), jnp.float32)
    t = jax.random.randint(k3, (B,), 0, N_T, jnp.int32)

    out = discriminator_forward(params, x_t, t, x_tp1)
    out = jax.block_until_ready(out)

    # Pure-JAX f32 reference of the exact module math.
    t_emb = jnp.take(params["emb"], t, axis=0)
    h = jnp.concatenate([x_t, t_emb, x_tp1], axis=1)
    for i in range(1, 4):
        h = h @ params[f"w{i}"] + params[f"b{i}"]
        h = jnp.where(h > 0, h, NEG_SLOPE * h)
    ref = jnp.squeeze(h @ params["w4"] + params["b4"])

    assert out.shape == (B,), out.shape
    # bf16 MXU operands -> allow bf16-level tolerance vs the f32 reference.
    assert jnp.allclose(out, ref, atol=3e-2, rtol=3e-2), (out, ref)
    print("KERNEL_OK")
</pallas_src>

<mosaic_0001>
module attributes {stable_mosaic.version = 11 : i64} {
  func.func @disc_kernel(%arg0: i32, %arg1: memref<128x2xf32, #tpu.memory_space<vmem>>, %arg2: memref<128x2xf32, #tpu.memory_space<vmem>>, %arg3: memref<128x1xi32, #tpu.memory_space<vmem>>, %arg4: memref<8x128xf32, #tpu.memory_space<vmem>>, %arg5: memref<128x128xbf16, #tpu.memory_space<vmem>>, %arg6: memref<128x128xbf16, #tpu.memory_space<vmem>>, %arg7: memref<3x128xf32, #tpu.memory_space<vmem>>, %arg8: memref<1x1xf32, #tpu.memory_space<vmem>>, %arg9: memref<128x1xf32, #tpu.memory_space<vmem>>) attributes {dimension_semantics = [#tpu.dimension_semantics<parallel>], iteration_bounds = array<i64: 1>, scalar_prefetch = 0 : i64, scratch_operands = 0 : i64, tpu.core_type = #tpu.core_type<tc>, window_params = [{transform_indices = @transform_0, window_bounds = array<i64: 128, 2>}, {transform_indices = @transform_1, window_bounds = array<i64: 128, 2>}, {transform_indices = @transform_2, window_bounds = array<i64: 128, 1>}, {pipeline_mode = #tpu.pipeline_mode<synchronous>, transform_indices = @transform_3, window_bounds = array<i64: 8, 128>}, {pipeline_mode = #tpu.pipeline_mode<synchronous>, transform_indices = @transform_4, window_bounds = array<i64: 128, 128>}, {pipeline_mode = #tpu.pipeline_mode<synchronous>, transform_indices = @transform_5, window_bounds = array<i64: 128, 128>}, {pipeline_mode = #tpu.pipeline_mode<synchronous>, transform_indices = @transform_6, window_bounds = array<i64: 3, 128>}, {pipeline_mode = #tpu.pipeline_mode<synchronous>, transform_indices = @transform_7, window_bounds = array<i64: 1, 1>}, {transform_indices = @transform_8, window_bounds = array<i64: 128, 1>}]} {
    %c0 = arith.constant 0 : index
    %c0_0 = arith.constant 0 : index
    %0 = vector.load %arg1[%c0, %c0_0] : memref<128x2xf32, #tpu.memory_space<vmem>>, vector<128x2xf32>
    %c0_1 = arith.constant 0 : index
    %c0_2 = arith.constant 0 : index
    %1 = vector.load %arg2[%c0_1, %c0_2] : memref<128x2xf32, #tpu.memory_space<vmem>>, vector<128x2xf32>
    %c0_3 = arith.constant 0 : index
    %c0_4 = arith.constant 0 : index
    %2 = vector.load %arg4[%c0_3, %c0_4] : memref<8x128xf32, #tpu.memory_space<vmem>>, vector<8x128xf32>
    %3 = vector.extract_strided_slice %0 {offsets = [0, 0], sizes = [128, 1], strides = [1, 1]} : vector<128x2xf32> to vector<128x1xf32>
    %4 = vector.extract_strided_slice %2 {offsets = [0, 0], sizes = [1, 128], strides = [1, 1]} : vector<8x128xf32> to vector<1x128xf32>
    %5 = vector.broadcast %3 : vector<128x1xf32> to vector<128x128xf32>
    %6 = vector.broadcast %4 : vector<1x128xf32> to vector<128x128xf32>
    %7 = arith.mulf %5, %6 : vector<128x128xf32>
    %8 = vector.extract_strided_slice %0 {offsets = [0, 1], sizes = [128, 1], strides = [1, 1]} : vector<128x2xf32> to vector<128x1xf32>
    %9 = vector.extract_strided_slice %2 {offsets = [1, 0], sizes = [1, 128], strides = [1, 1]} : vector<8x128xf32> to vector<1x128xf32>
    %10 = vector.broadcast %8 : vector<128x1xf32> to vector<128x128xf32>
    %11 = vector.broadcast %9 : vector<1x128xf32> to vector<128x128xf32>
    %12 = arith.mulf %10, %11 : vector<128x128xf32>
    %13 = arith.addf %7, %12 : vector<128x128xf32>
    %14 = vector.extract_strided_slice %1 {offsets = [0, 0], sizes = [128, 1], strides = [1, 1]} : vector<128x2xf32> to vector<128x1xf32>
    %15 = vector.extract_strided_slice %2 {offsets = [2, 0], sizes = [1, 128], strides = [1, 1]} : vector<8x128xf32> to vector<1x128xf32>
    %16 = vector.broadcast %14 : vector<128x1xf32> to vector<128x128xf32>
    %17 = vector.broadcast %15 : vector<1x128xf32> to vector<128x128xf32>
    %18 = arith.mulf %16, %17 : vector<128x128xf32>
    %19 = arith.addf %13, %18 : vector<128x128xf32>
    %20 = vector.extract_strided_slice %1 {offsets = [0, 1], sizes = [128, 1], strides = [1, 1]} : vector<128x2xf32> to vector<128x1xf32>
    %21 = vector.extract_strided_slice %2 {offsets = [3, 0], sizes = [1, 128], strides = [1, 1]} : vector<8x128xf32> to vector<1x128xf32>
    %22 = vector.broadcast %20 : vector<128x1xf32> to vector<128x128xf32>
    %23 = vector.broadcast %21 : vector<1x128xf32> to vector<128x128xf32>
    %24 = arith.mulf %22, %23 : vector<128x128xf32>
    %25 = arith.addf %19, %24 : vector<128x128xf32>
    %c0_5 = arith.constant 0 : index
    %c0_6 = arith.constant 0 : index
    %26 = vector.load %arg3[%c0_5, %c0_6] : memref<128x1xi32, #tpu.memory_space<vmem>>, vector<128x1xi32>
    %c0_i32 = arith.constant 0 : i32
    %27 = vector.broadcast %c0_i32 : i32 to vector<128x1xi32>
    %28 = arith.cmpi eq, %26, %27 : vector<128x1xi32>
    %29 = vector.extract_strided_slice %2 {offsets = [4, 0], sizes = [1, 128], strides = [1, 1]} : vector<8x128xf32> to vector<1x128xf32>
    %cst = arith.constant 0.000000e+00 : f32
    %30 = vector.shape_cast %28 : vector<128x1xi1> to vector<128x1xi1>
    %31 = vector.broadcast %30 : vector<128x1xi1> to vector<128x128xi1>
    %32 = vector.shape_cast %29 : vector<1x128xf32> to vector<1x128xf32>
    %33 = vector.broadcast %32 : vector<1x128xf32> to vector<128x128xf32>
    %34 = vector.broadcast %cst : f32 to vector<128x128xf32>
    %35 = arith.select %31, %33, %34 : vector<128x128xi1>, vector<128x128xf32>
    %36 = arith.addf %25, %35 : vector<128x128xf32>
    %c1_i32 = arith.constant 1 : i32
    %37 = vector.broadcast %c1_i32 : i32 to vector<128x1xi32>
    %38 = arith.cmpi eq, %26, %37 : vector<128x1xi32>
    %39 = vector.extract_strided_slice %2 {offsets = [5, 0], sizes = [1, 128], strides = [1, 1]} : vector<8x128xf32> to vector<1x128xf32>
    %cst_7 = arith.constant 0.000000e+00 : f32
    %40 = vector.shape_cast %38 : vector<128x1xi1> to vector<128x1xi1>
    %41 = vector.broadcast %40 : vector<128x1xi1> to vector<128x128xi1>
    %42 = vector.shape_cast %39 : vector<1x128xf32> to vector<1x128xf32>
    %43 = vector.broadcast %42 : vector<1x128xf32> to vector<128x128xf32>
    %44 = vector.broadcast %cst_7 : f32 to vector<128x128xf32>
    %45 = arith.select %41, %43, %44 : vector<128x128xi1>, vector<128x128xf32>
    %46 = arith.addf %36, %45 : vector<128x128xf32>
    %c2_i32 = arith.constant 2 : i32
    %47 = vector.broadcast %c2_i32 : i32 to vector<128x1xi32>
    %48 = arith.cmpi eq, %26, %47 : vector<128x1xi32>
    %49 = vector.extract_strided_slice %2 {offsets = [6, 0], sizes = [1, 128], strides = [1, 1]} : vector<8x128xf32> to vector<1x128xf32>
    %cst_8 = arith.constant 0.000000e+00 : f32
    %50 = vector.shape_cast %48 : vector<128x1xi1> to vector<128x1xi1>
    %51 = vector.broadcast %50 : vector<128x1xi1> to vector<128x128xi1>
    %52 = vector.shape_cast %49 : vector<1x128xf32> to vector<1x128xf32>
    %53 = vector.broadcast %52 : vector<1x128xf32> to vector<128x128xf32>
    %54 = vector.broadcast %cst_8 : f32 to vector<128x128xf32>
    %55 = arith.select %51, %53, %54 : vector<128x128xi1>, vector<128x128xf32>
    %56 = arith.addf %46, %55 : vector<128x128xf32>
    %c3_i32 = arith.constant 3 : i32
    %57 = vector.broadcast %c3_i32 : i32 to vector<128x1xi32>
    %58 = arith.cmpi eq, %26, %57 : vector<128x1xi32>
    %59 = vector.extract_strided_slice %2 {offsets = [7, 0], sizes = [1, 128], strides = [1, 1]} : vector<8x128xf32> to vector<1x128xf32>
    %cst_9 = arith.constant 0.000000e+00 : f32
    %60 = vector.shape_cast %58 : vector<128x1xi1> to vector<128x1xi1>
    %61 = vector.broadcast %60 : vector<128x1xi1> to vector<128x128xi1>
    %62 = vector.shape_cast %59 : vector<1x128xf32> to vector<1x128xf32>
    %63 = vector.broadcast %62 : vector<1x128xf32> to vector<128x128xf32>
    %64 = vector.broadcast %cst_9 : f32 to vector<128x128xf32>
    %65 = arith.select %61, %63, %64 : vector<128x128xi1>, vector<128x128xf32>
    %66 = arith.addf %56, %65 : vector<128x128xf32>
    %cst_10 = arith.constant 0.000000e+00 : f32
    %67 = vector.broadcast %cst_10 : f32 to vector<128x128xf32>
    %68 = arith.cmpf ogt, %66, %67 : vector<128x128xf32>
    %cst_11 = arith.constant 2.000000e-01 : f32
    %69 = vector.broadcast %cst_11 : f32 to vector<128x128xf32>
    %70 = arith.mulf %69, %66 : vector<128x128xf32>
    %71 = arith.select %68, %66, %70 : vector<128x128xi1>, vector<128x128xf32>
    %c0_12 = arith.constant 0 : index
    %c0_13 = arith.constant 0 : index
    %72 = vector.load %arg7[%c0_12, %c0_13] : memref<3x128xf32, #tpu.memory_space<vmem>>, vector<3x128xf32>
    %73 = arith.truncf %71 : vector<128x128xf32> to vector<128x128xbf16>
    %c0_14 = arith.constant 0 : index
    %c0_15 = arith.constant 0 : index
    %74 = vector.load %arg5[%c0_14, %c0_15] : memref<128x128xbf16, #tpu.memory_space<vmem>>, vector<128x128xbf16>
    %cst_16 = arith.constant dense<0.000000e+00> : vector<128x128xf32>
    %75 = tpu.matmul %73, %74, %cst_16 {dimension_numbers = #tpu.dot_dimension_numbers<[1], [0], [0], [1], [0, 0, 1, 1], [], []>} : vector<128x128xbf16>, vector<128x128xbf16>, vector<128x128xf32> -> vector<128x128xf32>
    %76 = vector.extract_strided_slice %72 {offsets = [0, 0], sizes = [1, 128], strides = [1, 1]} : vector<3x128xf32> to vector<1x128xf32>
    %77 = vector.broadcast %76 : vector<1x128xf32> to vector<128x128xf32>
    %78 = arith.addf %75, %77 : vector<128x128xf32>
    %cst_17 = arith.constant 0.000000e+00 : f32
    %79 = vector.broadcast %cst_17 : f32 to vector<128x128xf32>
    %80 = arith.cmpf ogt, %78, %79 : vector<128x128xf32>
    %cst_18 = arith.constant 2.000000e-01 : f32
    %81 = vector.broadcast %cst_18 : f32 to vector<128x128xf32>
    %82 = arith.mulf %81, %78 : vector<128x128xf32>
    %83 = arith.select %80, %78, %82 : vector<128x128xi1>, vector<128x128xf32>
    %84 = arith.truncf %83 : vector<128x128xf32> to vector<128x128xbf16>
    %c0_19 = arith.constant 0 : index
    %c0_20 = arith.constant 0 : index
    %85 = vector.load %arg6[%c0_19, %c0_20] : memref<128x128xbf16, #tpu.memory_space<vmem>>, vector<128x128xbf16>
    %cst_21 = arith.constant dense<0.000000e+00> : vector<128x128xf32>
    %86 = tpu.matmul %84, %85, %cst_21 {dimension_numbers = #tpu.dot_dimension_numbers<[1], [0], [0], [1], [0, 0, 1, 1], [], []>} : vector<128x128xbf16>, vector<128x128xbf16>, vector<128x128xf32> -> vector<128x128xf32>
    %87 = vector.extract_strided_slice %72 {offsets = [1, 0], sizes = [1, 128], strides = [1, 1]} : vector<3x128xf32> to vector<1x128xf32>
    %88 = vector.broadcast %87 : vector<1x128xf32> to vector<128x128xf32>
    %89 = arith.addf %86, %88 : vector<128x128xf32>
    %cst_22 = arith.constant 0.000000e+00 : f32
    %90 = vector.broadcast %cst_22 : f32 to vector<128x128xf32>
    %91 = arith.cmpf ogt, %89, %90 : vector<128x128xf32>
    %cst_23 = arith.constant 2.000000e-01 : f32
    %92 = vector.broadcast %cst_23 : f32 to vector<128x128xf32>
    %93 = arith.mulf %92, %89 : vector<128x128xf32>
    %94 = arith.select %91, %89, %93 : vector<128x128xi1>, vector<128x128xf32>
    %95 = vector.extract_strided_slice %72 {offsets = [2, 0], sizes = [1, 128], strides = [1, 1]} : vector<3x128xf32> to vector<1x128xf32>
    %96 = vector.broadcast %95 : vector<1x128xf32> to vector<128x128xf32>
    %97 = arith.mulf %94, %96 : vector<128x128xf32>
    %cst_24 = arith.constant dense<0.000000e+00> : vector<128xf32>
    %98 = vector.multi_reduction <add>, %97, %cst_24 [1] : vector<128x128xf32> to vector<128xf32>
    %99 = vector.shape_cast %98 : vector<128xf32> to vector<128x1xf32>
    %c0_25 = arith.constant 0 : index
    %c0_26 = arith.constant 0 : index
    %100 = vector.load %arg8[%c0_25, %c0_26] : memref<1x1xf32, #tpu.memory_space<vmem>>, vector<1x1xf32>
    %101 = vector.broadcast %100 : vector<1x1xf32> to vector<128x1xf32>
    %102 = arith.addf %99, %101 : vector<128x1xf32>
    %c0_27 = arith.constant 0 : index
    %c0_28 = arith.constant 0 : index
    %103 = vector.load %arg9[%c0_27, %c0_28] : memref<128x1xf32, #tpu.memory_space<vmem>>, vector<128x1xf32>
    tpu.vector_store %arg9[%c0_27, %c0_28], %102 {strides = array<i32>} : memref<128x1xf32, #tpu.memory_space<vmem>>, vector<128x1xf32>,
    return
  }
  func.func @transform_0(%arg0: i32) -> (i32, i32) {
    %c0_i32 = arith.constant 0 : i32
    %c0_i32_0 = arith.constant 0 : i32
    return %arg0, %c0_i32 : i32, i32
  }
  func.func @transform_1(%arg0: i32) -> (i32, i32) {
    %c0_i32 = arith.constant 0 : i32
    %c0_i32_0 = arith.constant 0 : i32
    return %arg0, %c0_i32 : i32, i32
  }
  func.func @transform_2(%arg0: i32) -> (i32, i32) {
    %c0_i32 = arith.constant 0 : i32
    %c0_i32_0 = arith.constant 0 : i32
    return %arg0, %c0_i32 : i32, i32
  }
  func.func @transform_3(%arg0: i32) -> (i32, i32) {
    %c0_i32 = arith.constant 0 : i32
    %c0_i32_0 = arith.constant 0 : i32
    %c0_i32_1 = arith.constant 0 : i32
    return %c0_i32, %c0_i32_0 : i32, i32
  }
  func.func @transform_4(%arg0: i32) -> (i32, i32) {
    %c0_i32 = arith.constant 0 : i32
    %c0_i32_0 = arith.constant 0 : i32
    %c0_i32_1 = arith.constant 0 : i32
    return %c0_i32, %c0_i32_0 : i32, i32
  }
  func.func @transform_5(%arg0: i32) -> (i32, i32) {
    %c0_i32 = arith.constant 0 : i32
    %c0_i32_0 = arith.constant 0 : i32
    %c0_i32_1 = arith.constant 0 : i32
    return %c0_i32, %c0_i32_0 : i32, i32
  }
  func.func @transform_6(%arg0: i32) -> (i32, i32) {
    %c0_i32 = arith.constant 0 : i32
    %c0_i32_0 = arith.constant 0 : i32
    %c0_i32_1 = arith.constant 0 : i32
    return %c0_i32, %c0_i32_0 : i32, i32
  }
  func.func @transform_7(%arg0: i32) -> (i32, i32) {
    %c0_i32 = arith.constant 0 : i32
    %c0_i32_0 = arith.constant 0 : i32
    %c0_i32_1 = arith.constant 0 : i32
    return %c0_i32, %c0_i32_0 : i32, i32
  }
  func.func @transform_8(%arg0: i32) -> (i32, i32) {
    %c0_i32 = arith.constant 0 : i32
    %c0_i32_0 = arith.constant 0 : i32
    return %arg0, %c0_i32 : i32, i32
  }
}

</mosaic_0001>

<llo_original>
// kernel: discriminator_forward.1
$region0: #{discriminator_forward.1}
  #allocation0 [shape = 'u32[]', space=smem, size = 0x4, offset = 0x4, fixed_abs, tag = 'smem constant byte address 0x4 - core index']
  #allocation1 [shape = 'u32[144,128]{1,0:T(1,128)}', space=vmem, size = 0x12000, scoped, tag = 'internal scratch']
  #allocation2 [shape = 'f32[1,1]{1,0:T(1,128)S(1)}', space=vmem, size = 0x200, scoped, tag = 'scoped memory for discriminator_forward.1']
  %s0 = inlined_call_operand.vmem [shape: f32[128,2], index: 0, kind: input, shape index: {}]
  %s1 = inlined_call_operand.vmem [shape: f32[128,2], index: 1, kind: input, shape index: {}]
  %s2 = inlined_call_operand.vmem [shape: s32[128,1], index: 2, kind: input, shape index: {}]
  %s3 = inlined_call_operand.vmem [shape: f32[8,128], index: 3, kind: input, shape index: {}]
  %s4 = inlined_call_operand.vmem [shape: bf16[128,128], index: 4, kind: input, shape index: {}]
  %s5 = inlined_call_operand.vmem [shape: bf16[128,128], index: 5, kind: input, shape index: {}]
  %s6 = inlined_call_operand.vmem [shape: f32[3,128], index: 6, kind: input, shape index: {}]
  %s7 = inlined_call_operand.<no memory space> [shape: f32[1,1], index: 7, kind: input, shape index: {}]
  %s8 = inlined_call_operand.vmem [shape: f32[128,1], index: 8, kind: output, shape index: {}]
  %s9 = sld [smem:[#allocation0]]
  $region42: #{discriminator_forward.1} parent=0
    _
  %s11 = ssub.s32 1, %s9
  %s12 = scalar_select 0, %s11, %s9
  %v13 = vstv %s7
  %14 = vst [vmem:[#allocation2] sm:$0x1] %v13
  // Predicated region
  $region2: #{discriminator_forward.1} parent=0 // pred_check
    _
  $region3: #{discriminator_forward.1} parent=0 // pred_check_branch
    %16 = sbr.rel (0) target = $region5
  $region4: #{discriminator_forward.1} parent=0 // pred_region
    _
  $region5: #{discriminator_forward.1} parent=0 // pred_fallthru
    _
  // Predicated region
  $region6: #{discriminator_forward.1} parent=0 // pred_check
    _
  $region7: #{discriminator_forward.1} parent=0 // pred_check_branch
    %18 = sbr.rel (0) target = $region9
  $region8: #{discriminator_forward.1} parent=0 // pred_region
    _
  $region9: #{discriminator_forward.1} parent=0 // pred_fallthru
    _
  // Predicated region
  $region10: #{discriminator_forward.1} parent=0 // pred_check
    _
  $region11: #{discriminator_forward.1} parent=0 // pred_check_branch
    %20 = sbr.rel (0) target = $region13
  $region12: #{discriminator_forward.1} parent=0 // pred_region
    _
  $region13: #{discriminator_forward.1} parent=0 // pred_fallthru
    _
  // Predicated region
  $region14: #{discriminator_forward.1} parent=0 // pred_check
    _
  $region15: #{discriminator_forward.1} parent=0 // pred_check_branch
    %22 = sbr.rel (0) target = $region17
  $region16: #{discriminator_forward.1} parent=0 // pred_region
    _
  $region17: #{discriminator_forward.1} parent=0 // pred_fallthru
    _
  // Predicated region
  $region18: #{discriminator_forward.1} parent=0 // pred_check
    _
  $region19: #{discriminator_forward.1} parent=0 // pred_check_branch
    %24 = sbr.rel (0) target = $region21
  $region20: #{discriminator_forward.1} parent=0 // pred_region
    _
  $region21: #{discriminator_forward.1} parent=0 // pred_fallthru
    _
  // Predicated region
  $region22: #{discriminator_forward.1} parent=0 // pred_check
    _
  $region23: #{discriminator_forward.1} parent=0 // pred_check_branch
    %26 = sbr.rel (0) target = $region25
  $region24: #{discriminator_forward.1} parent=0 // pred_region
    _
  $region25: #{discriminator_forward.1} parent=0 // pred_fallthru
    _
  // Predicated region
  $region26: #{discriminator_forward.1} parent=0 // pred_check
    _
  $region27: #{discriminator_forward.1} parent=0 // pred_check_branch
    %28 = sbr.rel (0) target = $region29
  $region28: #{discriminator_forward.1} parent=0 // pred_region
    _
  $region29: #{discriminator_forward.1} parent=0 // pred_fallthru
    _
  // Predicated region
  $region30: #{discriminator_forward.1} parent=0 // pred_check
    _
  $region31: #{discriminator_forward.1} parent=0 // pred_check_branch
    %30 = sbr.rel (0) target = $region33
  $region32: #{discriminator_forward.1} parent=0 // pred_region
    _
  $region33: #{discriminator_forward.1} parent=0 // pred_fallthru
    _
  %v32 = vld [vmem:[%s0] sm:$0xff]
  %v33 = vld [vmem:[%s0 + $0x8] sm:$0xff]
  %v34 = vld [vmem:[%s0 + $0x10] sm:$0xff]
  %v35 = vld [vmem:[%s0 + $0x18] sm:$0xff]
  %v36 = vld [vmem:[%s0 + $0x20] sm:$0xff]
  %v37 = vld [vmem:[%s0 + $0x28] sm:$0xff]
  %v38 = vld [vmem:[%s0 + $0x30] sm:$0xff]
  %v39 = vld [vmem:[%s0 + $0x38] sm:$0xff]
  %v40 = vld [vmem:[%s0 + $0x40] sm:$0xff]
  %v41 = vld [vmem:[%s0 + $0x48] sm:$0xff]
  %v42 = vld [vmem:[%s0 + $0x50] sm:$0xff]
  %v43 = vld [vmem:[%s0 + $0x58] sm:$0xff]
  %v44 = vld [vmem:[%s0 + $0x60] sm:$0xff]
  %v45 = vld [vmem:[%s0 + $0x68] sm:$0xff]
  %v46 = vld [vmem:[%s0 + $0x70] sm:$0xff]
  %v47 = vld [vmem:[%s0 + $0x78] sm:$0xff]
  %v48 = vld [vmem:[%s1] sm:$0xff]
  %v49 = vld [vmem:[%s1 + $0x8] sm:$0xff]
  %v50 = vld [vmem:[%s1 + $0x10] sm:$0xff]
  %v51 = vld [vmem:[%s1 + $0x18] sm:$0xff]
  %v52 = vld [vmem:[%s1 + $0x20] sm:$0xff]
  %v53 = vld [vmem:[%s1 + $0x28] sm:$0xff]
  %v54 = vld [vmem:[%s1 + $0x30] sm:$0xff]
  %v55 = vld [vmem:[%s1 + $0x38] sm:$0xff]
  %v56 = vld [vmem:[%s1 + $0x40] sm:$0xff]
  %v57 = vld [vmem:[%s1 + $0x48] sm:$0xff]
  %v58 = vld [vmem:[%s1 + $0x50] sm:$0xff]
  %v59 = vld [vmem:[%s1 + $0x58] sm:$0xff]
  %v60 = vld [vmem:[%s1 + $0x60] sm:$0xff]
  %v61 = vld [vmem:[%s1 + $0x68] sm:$0xff]
  %v62 = vld [vmem:[%s1 + $0x70] sm:$0xff]
  %v63 = vld [vmem:[%s1 + $0x78] sm:$0xff]
  %v64 = vld [vmem:[%s3] sm:$0xff]
  %66 = vset.pattern.permute.xlu0 0
  %67 = vperm.xlu0 %66, %v32
  %v68 = vpop.permute.xlu0 %67
  %71 = vset.pattern.permute.xlu0 0
  %72 = vperm.xlu0 %71, %v33
  %v73 = vpop.permute.xlu0 %72
  %76 = vset.pattern.permute.xlu0 0
  %77 = vperm.xlu0 %76, %v34
  %v78 = vpop.permute.xlu0 %77
  %81 = vset.pattern.permute.xlu0 0
  %82 = vperm.xlu0 %81, %v35
  %v83 = vpop.permute.xlu0 %82
  %86 = vset.pattern.permute.xlu0 0
  %87 = vperm.xlu0 %86, %v36
  %v88 = vpop.permute.xlu0 %87
  %91 = vset.pattern.permute.xlu0 0
  %92 = vperm.xlu0 %91, %v37
  %v93 = vpop.permute.xlu0 %92
  %96 = vset.pattern.permute.xlu0 0
  %97 = vperm.xlu0 %96, %v38
  %v98 = vpop.permute.xlu0 %97
  %101 = vset.pattern.permute.xlu0 0
  %102 = vperm.xlu0 %101, %v39
  %v103 = vpop.permute.xlu0 %102
  %106 = vset.pattern.permute.xlu0 0
  %107 = vperm.xlu0 %106, %v40
  %v108 = vpop.permute.xlu0 %107
  %111 = vset.pattern.permute.xlu0 0
  %112 = vperm.xlu0 %111, %v41
  %v113 = vpop.permute.xlu0 %112
  %116 = vset.pattern.permute.xlu0 0
  %117 = vperm.xlu0 %116, %v42
  %v118 = vpop.permute.xlu0 %117
  %121 = vset.pattern.permute.xlu0 0
  %122 = vperm.xlu0 %121, %v43
  %v123 = vpop.permute.xlu0 %122
  %126 = vset.pattern.permute.xlu0 0
  %127 = vperm.xlu0 %126, %v44
  %v128 = vpop.permute.xlu0 %127
  %131 = vset.pattern.permute.xlu0 0
  %132 = vperm.xlu0 %131, %v45
  %v133 = vpop.permute.xlu0 %132
  %136 = vset.pattern.permute.xlu0 0
  %137 = vperm.xlu0 %136, %v46
  %v138 = vpop.permute.xlu0 %137
  %141 = vset.pattern.permute.xlu0 0
  %142 = vperm.xlu0 %141, %v47
  %v143 = vpop.permute.xlu0 %142
  %v145 = vlaneseq
  %v146 = vshrl.u32 %v145, 7
  %v147 = vsub.s32 0, %v146
  %v148 = vrot.slane %v64, %v147
  %v149 = vmul.f32 %v68, %v148
  %v150 = vmul.f32 %v73, %v148
  %v151 = vmul.f32 %v78, %v148
  %v152 = vmul.f32 %v83, %v148
  %v153 = vmul.f32 %v88, %v148
  %v154 = vmul.f32 %v93, %v148
  %v155 = vmul.f32 %v98, %v148
  %v156 = vmul.f32 %v103, %v148
  %v157 = vmul.f32 %v108, %v148
  %v158 = vmul.f32 %v113, %v148
  %v159 = vmul.f32 %v118, %v148
  %v160 = vmul.f32 %v123, %v148
  %v161 = vmul.f32 %v128, %v148
  %v162 = vmul.f32 %v133, %v148
  %v163 = vmul.f32 %v138, %v148
  %v164 = vmul.f32 %v143, %v148
  %165 = vset.pattern.permute.xlu0 1
  %166 = vperm.xlu0 %165, %v32
  %v167 = vpop.permute.xlu0 %166
  %169 = vset.pattern.permute.xlu0 1
  %170 = vperm.xlu0 %169, %v33
  %v171 = vpop.permute.xlu0 %170
  %173 = vset.pattern.permute.xlu0 1
  %174 = vperm.xlu0 %173, %v34
  %v175 = vpop.permute.xlu0 %174
  %177 = vset.pattern.permute.xlu0 1
  %178 = vperm.xlu0 %177, %v35
  %v179 = vpop.permute.xlu0 %178
  %181 = vset.pattern.permute.xlu0 1
  %182 = vperm.xlu0 %181, %v36
  %v183 = vpop.permute.xlu0 %182
  %185 = vset.pattern.permute.xlu0 1
  %186 = vperm.xlu0 %185, %v37
  %v187 = vpop.permute.xlu0 %186
  %189 = vset.pattern.permute.xlu0 1
  %190 = vperm.xlu0 %189, %v38
  %v191 = vpop.permute.xlu0 %190
  %193 = vset.pattern.permute.xlu0 1
  %194 = vperm.xlu0 %193, %v39
  %v195 = vpop.permute.xlu0 %194
  %197 = vset.pattern.permute.xlu0 1
  %198 = vperm.xlu0 %197, %v40
  %v199 = vpop.permute.xlu0 %198
  %201 = vset.pattern.permute.xlu0 1
  %202 = vperm.xlu0 %201, %v41
  %v203 = vpop.permute.xlu0 %202
  %205 = vset.pattern.permute.xlu0 1
  %206 = vperm.xlu0 %205, %v42
  %v207 = vpop.permute.xlu0 %206
  %209 = vset.pattern.permute.xlu0 1
  %210 = vperm.xlu0 %209, %v43
  %v211 = vpop.permute.xlu0 %210
  %213 = vset.pattern.permute.xlu0 1
  %214 = vperm.xlu0 %213, %v44
  %v215 = vpop.permute.xlu0 %214
  %217 = vset.pattern.permute.xlu0 1
  %218 = vperm.xlu0 %217, %v45
  %v219 = vpop.permute.xlu0 %218
  %221 = vset.pattern.permute.xlu0 1
  %222 = vperm.xlu0 %221, %v46
  %v223 = vpop.permute.xlu0 %222
  %225 = vset.pattern.permute.xlu0 1
  %226 = vperm.xlu0 %225, %v47
  %v227 = vpop.permute.xlu0 %226
  %v229 = vlaneseq
  %v230 = vshrl.u32 %v229, 7
  %v231 = vsub.s32 1, %v230
  %v232 = vrot.slane %v64, %v231
  %v233 = vmul.f32 %v167, %v232
  %v234 = vmul.f32 %v171, %v232
  %v235 = vmul.f32 %v175, %v232
  %v236 = vmul.f32 %v179, %v232
  %v237 = vmul.f32 %v183, %v232
  %v238 = vmul.f32 %v187, %v232
  %v239 = vmul.f32 %v191, %v232
  %v240 = vmul.f32 %v195, %v232
  %v241 = vmul.f32 %v199, %v232
  %v242 = vmul.f32 %v203, %v232
  %v243 = vmul.f32 %v207, %v232
  %v244 = vmul.f32 %v211, %v232
  %v245 = vmul.f32 %v215, %v232
  %v246 = vmul.f32 %v219, %v232
  %v247 = vmul.f32 %v223, %v232
  %v248 = vmul.f32 %v227, %v232
  %v249 = vadd.f32 %v149, %v233
  %v250 = vadd.f32 %v150, %v234
  %v251 = vadd.f32 %v151, %v235
  %v252 = vadd.f32 %v152, %v236
  %v253 = vadd.f32 %v153, %v237
  %v254 = vadd.f32 %v154, %v238
  %v255 = vadd.f32 %v155, %v239
  %v256 = vadd.f32 %v156, %v240
  %v257 = vadd.f32 %v157, %v241
  %v258 = vadd.f32 %v158, %v242
  %v259 = vadd.f32 %v159, %v243
  %v260 = vadd.f32 %v160, %v244
  %v261 = vadd.f32 %v161, %v245
  %v262 = vadd.f32 %v162, %v246
  %v263 = vadd.f32 %v163, %v247
  %v264 = vadd.f32 %v164, %v248
  %266 = vset.pattern.permute.xlu0 0
  %267 = vperm.xlu0 %266, %v48
  %v268 = vpop.permute.xlu0 %267
  %271 = vset.pattern.permute.xlu0 0
  %272 = vperm.xlu0 %271, %v49
  %v273 = vpop.permute.xlu0 %272
  %276 = vset.pattern.permute.xlu0 0
  %277 = vperm.xlu0 %276, %v50
  %v278 = vpop.permute.xlu0 %277
  %281 = vset.pattern.permute.xlu0 0
  %282 = vperm.xlu0 %281, %v51
  %v283 = vpop.permute.xlu0 %282
  %286 = vset.pattern.permute.xlu0 0
  %287 = vperm.xlu0 %286, %v52
  %v288 = vpop.permute.xlu0 %287
  %291 = vset.pattern.permute.xlu0 0
  %292 = vperm.xlu0 %291, %v53
  %v293 = vpop.permute.xlu0 %292
  %296 = vset.pattern.permute.xlu0 0
  %297 = vperm.xlu0 %296, %v54
  %v298 = vpop.permute.xlu0 %297
  %301 = vset.pattern.permute.xlu0 0
  %302 = vperm.xlu0 %301, %v55
  %v303 = vpop.permute.xlu0 %302
  %306 = vset.pattern.permute.xlu0 0
  %307 = vperm.xlu0 %306, %v56
  %v308 = vpop.permute.xlu0 %307
  %311 = vset.pattern.permute.xlu0 0
  %312 = vperm.xlu0 %311, %v57
  %v313 = vpop.permute.xlu0 %312
  %316 = vset.pattern.permute.xlu0 0
  %317 = vperm.xlu0 %316, %v58
  %v318 = vpop.permute.xlu0 %317
  %321 = vset.pattern.permute.xlu0 0
  %322 = vperm.xlu0 %321, %v59
  %v323 = vpop.permute.xlu0 %322
  %326 = vset.pattern.permute.xlu0 0
  %327 = vperm.xlu0 %326, %v60
  %v328 = vpop.permute.xlu0 %327
  %331 = vset.pattern.permute.xlu0 0
  %332 = vperm.xlu0 %331, %v61
  %v333 = vpop.permute.xlu0 %332
  %336 = vset.pattern.permute.xlu0 0
  %337 = vperm.xlu0 %336, %v62
  %v338 = vpop.permute.xlu0 %337
  %341 = vset.pattern.permute.xlu0 0
  %342 = vperm.xlu0 %341, %v63
  %v343 = vpop.permute.xlu0 %342
  %v345 = vlaneseq
  %v346 = vshrl.u32 %v345, 7
  %v347 = vsub.s32 2, %v346
  %v348 = vrot.slane %v64, %v347
  %v349 = vmul.f32 %v268, %v348
  %v350 = vmul.f32 %v273, %v348
  %v351 = vmul.f32 %v278, %v348
  %v352 = vmul.f32 %v283, %v348
  %v353 = vmul.f32 %v288, %v348
  %v354 = vmul.f32 %v293, %v348
  %v355 = vmul.f32 %v298, %v348
  %v356 = vmul.f32 %v303, %v348
  %v357 = vmul.f32 %v308, %v348
  %v358 = vmul.f32 %v313, %v348
  %v359 = vmul.f32 %v318, %v348
  %v360 = vmul.f32 %v323, %v348
  %v361 = vmul.f32 %v328, %v348
  %v362 = vmul.f32 %v333, %v348
  %v363 = vmul.f32 %v338, %v348
  %v364 = vmul.f32 %v343, %v348
  %v365 = vadd.f32 %v249, %v349
  %v366 = vadd.f32 %v250, %v350
  %v367 = vadd.f32 %v251, %v351
  %v368 = vadd.f32 %v252, %v352
  %v369 = vadd.f32 %v253, %v353
  %v370 = vadd.f32 %v254, %v354
  %v371 = vadd.f32 %v255, %v355
  %v372 = vadd.f32 %v256, %v356
  %v373 = vadd.f32 %v257, %v357
  %v374 = vadd.f32 %v258, %v358
  %v375 = vadd.f32 %v259, %v359
  %v376 = vadd.f32 %v260, %v360
  %v377 = vadd.f32 %v261, %v361
  %v378 = vadd.f32 %v262, %v362
  %v379 = vadd.f32 %v263, %v363
  %v380 = vadd.f32 %v264, %v364
  %381 = vset.pattern.permute.xlu0 1
  %382 = vperm.xlu0 %381, %v48
  %v383 = vpop.permute.xlu0 %382
  %385 = vset.pattern.permute.xlu0 1
  %386 = vperm.xlu0 %385, %v49
  %v387 = vpop.permute.xlu0 %386
  %389 = vset.pattern.permute.xlu0 1
  %390 = vperm.xlu0 %389, %v50
  %v391 = vpop.permute.xlu0 %390
  %393 = vset.pattern.permute.xlu0 1
  %394 = vperm.xlu0 %393, %v51
  %v395 = vpop.permute.xlu0 %394
  %397 = vset.pattern.permute.xlu0 1
  %398 = vperm.xlu0 %397, %v52
  %v399 = vpop.permute.xlu0 %398
  %401 = vset.pattern.permute.xlu0 1
  %402 = vperm.xlu0 %401, %v53
  %v403 = vpop.permute.xlu0 %402
  %405 = vset.pattern.permute.xlu0 1
  %406 = vperm.xlu0 %405, %v54
  %v407 = vpop.permute.xlu0 %406
  %409 = vset.pattern.permute.xlu0 1
  %410 = vperm.xlu0 %409, %v55
  %v411 = vpop.permute.xlu0 %410
  %413 = vset.pattern.permute.xlu0 1
  %414 = vperm.xlu0 %413, %v56
  %v415 = vpop.permute.xlu0 %414
  %417 = vset.pattern.permute.xlu0 1
  %418 = vperm.xlu0 %417, %v57
  %v419 = vpop.permute.xlu0 %418
  %421 = vset.pattern.permute.xlu0 1
  %422 = vperm.xlu0 %421, %v58
  %v423 = vpop.permute.xlu0 %422
  %425 = vset.pattern.permute.xlu0 1
  %426 = vperm.xlu0 %425, %v59
  %v427 = vpop.permute.xlu0 %426
  %429 = vset.pattern.permute.xlu0 1
  %430 = vperm.xlu0 %429, %v60
  %v431 = vpop.permute.xlu0 %430
  %433 = vset.pattern.permute.xlu0 1
  %434 = vperm.xlu0 %433, %v61
  %v435 = vpop.permute.xlu0 %434
  %437 = vset.pattern.permute.xlu0 1
  %438 = vperm.xlu0 %437, %v62
  %v439 = vpop.permute.xlu0 %438
  %441 = vset.pattern.permute.xlu0 1
  %442 = vperm.xlu0 %441, %v63
  %v443 = vpop.permute.xlu0 %442
  %v445 = vlaneseq
  %v446 = vshrl.u32 %v445, 7
  %v447 = vsub.s32 3, %v446
  %v448 = vrot.slane %v64, %v447
  %v449 = vmul.f32 %v383, %v448
  %v450 = vmul.f32 %v387, %v448
  %v451 = vmul.f32 %v391, %v448
  %v452 = vmul.f32 %v395, %v448
  %v453 = vmul.f32 %v399, %v448
  %v454 = vmul.f32 %v403, %v448
  %v455 = vmul.f32 %v407, %v448
  %v456 = vmul.f32 %v411, %v448
  %v457 = vmul.f32 %v415, %v448
  %v458 = vmul.f32 %v419, %v448
  %v459 = vmul.f32 %v423, %v448
  %v460 = vmul.f32 %v427, %v448
  %v461 = vmul.f32 %v431, %v448
  %v462 = vmul.f32 %v435, %v448
  %v463 = vmul.f32 %v439, %v448
  %v464 = vmul.f32 %v443, %v448
  %v465 = vadd.f32 %v365, %v449
  %v466 = vadd.f32 %v366, %v450
  %v467 = vadd.f32 %v367, %v451
  %v468 = vadd.f32 %v368, %v452
  %v469 = vadd.f32 %v369, %v453
  %v470 = vadd.f32 %v370, %v454
  %v471 = vadd.f32 %v371, %v455
  %v472 = vadd.f32 %v372, %v456
  %v473 = vadd.f32 %v373, %v457
  %v474 = vadd.f32 %v374, %v458
  %v475 = vadd.f32 %v375, %v459
  %v476 = vadd.f32 %v376, %v460
  %v477 = vadd.f32 %v377, %v461
  %v478 = vadd.f32 %v378, %v462
  %v479 = vadd.f32 %v379, %v463
  %v480 = vadd.f32 %v380, %v464
  %v481 = vld [vmem:[%s2] sm:$0xff]
  %v482 = vld [vmem:[%s2 + $0x8] sm:$0xff]
  %v483 = vld [vmem:[%s2 + $0x10] sm:$0xff]
  %v484 = vld [vmem:[%s2 + $0x18] sm:$0xff]
  %v485 = vld [vmem:[%s2 + $0x20] sm:$0xff]
  %v486 = vld [vmem:[%s2 + $0x28] sm:$0xff]
  %v487 = vld [vmem:[%s2 + $0x30] sm:$0xff]
  %v488 = vld [vmem:[%s2 + $0x38] sm:$0xff]
  %v489 = vld [vmem:[%s2 + $0x40] sm:$0xff]
  %v490 = vld [vmem:[%s2 + $0x48] sm:$0xff]
  %v491 = vld [vmem:[%s2 + $0x50] sm:$0xff]
  %v492 = vld [vmem:[%s2 + $0x58] sm:$0xff]
  %v493 = vld [vmem:[%s2 + $0x60] sm:$0xff]
  %v494 = vld [vmem:[%s2 + $0x68] sm:$0xff]
  %v495 = vld [vmem:[%s2 + $0x70] sm:$0xff]
  %v496 = vld [vmem:[%s2 + $0x78] sm:$0xff]
  %vm497 = vcmp.eq.s32.totalorder %v481, 0
  %vm498 = vcmp.eq.s32.totalorder %v482, 0
  %vm499 = vcmp.eq.s32.totalorder %v483, 0
  %vm500 = vcmp.eq.s32.totalorder %v484, 0
  %vm501 = vcmp.eq.s32.totalorder %v485, 0
  %vm502 = vcmp.eq.s32.totalorder %v486, 0
  %vm503 = vcmp.eq.s32.totalorder %v487, 0
  %vm504 = vcmp.eq.s32.totalorder %v488, 0
  %vm505 = vcmp.eq.s32.totalorder %v489, 0
  %vm506 = vcmp.eq.s32.totalorder %v490, 0
  %vm507 = vcmp.eq.s32.totalorder %v491, 0
  %vm508 = vcmp.eq.s32.totalorder %v492, 0
  %vm509 = vcmp.eq.s32.totalorder %v493, 0
  %vm510 = vcmp.eq.s32.totalorder %v494, 0
  %vm511 = vcmp.eq.s32.totalorder %v495, 0
  %vm512 = vcmp.eq.s32.totalorder %v496, 0
  %v513 = vsel %vm497, 1, 0
  %v514 = vsel %vm498, 1, 0
  %v515 = vsel %vm499, 1, 0
  %v516 = vsel %vm500, 1, 0
  %v517 = vsel %vm501, 1, 0
  %v518 = vsel %vm502, 1, 0
  %v519 = vsel %vm503, 1, 0
  %v520 = vsel %vm504, 1, 0
  %v521 = vsel %vm505, 1, 0
  %v522 = vsel %vm506, 1, 0
  %v523 = vsel %vm507, 1, 0
  %v524 = vsel %vm508, 1, 0
  %v525 = vsel %vm509, 1, 0
  %v526 = vsel %vm510, 1, 0
  %v527 = vsel %vm511, 1, 0
  %v528 = vsel %vm512, 1, 0
  %529 = vset.pattern.permute.xlu0 0
  %530 = vperm.xlu0 %529, %v513
  %v531 = vpop.permute.xlu0 %530
  %532 = vset.pattern.permute.xlu0 0
  %533 = vperm.xlu0 %532, %v514
  %v534 = vpop.permute.xlu0 %533
  %535 = vset.pattern.permute.xlu0 0
  %536 = vperm.xlu0 %535, %v515
  %v537 = vpop.permute.xlu0 %536
  %538 = vset.pattern.permute.xlu0 0
  %539 = vperm.xlu0 %538, %v516
  %v540 = vpop.permute.xlu0 %539
  %541 = vset.pattern.permute.xlu0 0
  %542 = vperm.xlu0 %541, %v517
  %v543 = vpop.permute.xlu0 %542
  %544 = vset.pattern.permute.xlu0 0
  %545 = vperm.xlu0 %544, %v518
  %v546 = vpop.permute.xlu0 %545
  %547 = vset.pattern.permute.xlu0 0
  %548 = vperm.xlu0 %547, %v519
  %v549 = vpop.permute.xlu0 %548
  %550 = vset.pattern.permute.xlu0 0
  %551 = vperm.xlu0 %550, %v520
  %v552 = vpop.permute.xlu0 %551
  %553 = vset.pattern.permute.xlu0 0
  %554 = vperm.xlu0 %553, %v521
  %v555 = vpop.permute.xlu0 %554
  %556 = vset.pattern.permute.xlu0 0
  %557 = vperm.xlu0 %556, %v522
  %v558 = vpop.permute.xlu0 %557
  %559 = vset.pattern.permute.xlu0 0
  %560 = vperm.xlu0 %559, %v523
  %v561 = vpop.permute.xlu0 %560
  %562 = vset.pattern.permute.xlu0 0
  %563 = vperm.xlu0 %562, %v524
  %v564 = vpop.permute.xlu0 %563
  %565 = vset.pattern.permute.xlu0 0
  %566 = vperm.xlu0 %565, %v525
  %v567 = vpop.permute.xlu0 %566
  %568 = vset.pattern.permute.xlu0 0
  %569 = vperm.xlu0 %568, %v526
  %v570 = vpop.permute.xlu0 %569
  %571 = vset.pattern.permute.xlu0 0
  %572 = vperm.xlu0 %571, %v527
  %v573 = vpop.permute.xlu0 %572
  %574 = vset.pattern.permute.xlu0 0
  %575 = vperm.xlu0 %574, %v528
  %v576 = vpop.permute.xlu0 %575
  %vm577 = vcmp.eq.s32.totalorder %v531, 1
  %vm578 = vcmp.eq.s32.totalorder %v534, 1
  %vm579 = vcmp.eq.s32.totalorder %v537, 1
  %vm580 = vcmp.eq.s32.totalorder %v540, 1
  %vm581 = vcmp.eq.s32.totalorder %v543, 1
  %vm582 = vcmp.eq.s32.totalorder %v546, 1
  %vm583 = vcmp.eq.s32.totalorder %v549, 1
  %vm584 = vcmp.eq.s32.totalorder %v552, 1
  %vm585 = vcmp.eq.s32.totalorder %v555, 1
  %vm586 = vcmp.eq.s32.totalorder %v558, 1
  %vm587 = vcmp.eq.s32.totalorder %v561, 1
  %vm588 = vcmp.eq.s32.totalorder %v564, 1
  %vm589 = vcmp.eq.s32.totalorder %v567, 1
  %vm590 = vcmp.eq.s32.totalorder %v570, 1
  %vm591 = vcmp.eq.s32.totalorder %v573, 1
  %vm592 = vcmp.eq.s32.totalorder %v576, 1
  %v593 = vlaneseq
  %v594 = vshrl.u32 %v593, 7
  %v595 = vsub.s32 4, %v594
  %v596 = vrot.slane %v64, %v595
  %v597 = vsel %vm577, %v596, 0.0
  %v598 = vsel %vm578, %v596, 0.0
  %v599 = vsel %vm579, %v596, 0.0
  %v600 = vsel %vm580, %v596, 0.0
  %v601 = vsel %vm581, %v596, 0.0
  %v602 = vsel %vm582, %v596, 0.0
  %v603 = vsel %vm583, %v596, 0.0
  %v604 = vsel %vm584, %v596, 0.0
  %v605 = vsel %vm585, %v596, 0.0
  %v606 = vsel %vm586, %v596, 0.0
  %v607 = vsel %vm587, %v596, 0.0
  %v608 = vsel %vm588, %v596, 0.0
  %v609 = vsel %vm589, %v596, 0.0
  %v610 = vsel %vm590, %v596, 0.0
  %v611 = vsel %vm591, %v596, 0.0
  %v612 = vsel %vm592, %v596, 0.0
  %v613 = vadd.f32 %v465, %v597
  %v614 = vadd.f32 %v466, %v598
  %v615 = vadd.f32 %v467, %v599
  %v616 = vadd.f32 %v468, %v600
  %v617 = vadd.f32 %v469, %v601
  %v618 = vadd.f32 %v470, %v602
  %v619 = vadd.f32 %v471, %v603
  %v620 = vadd.f32 %v472, %v604
  %v621 = vadd.f32 %v473, %v605
  %v622 = vadd.f32 %v474, %v606
  %v623 = vadd.f32 %v475, %v607
  %v624 = vadd.f32 %v476, %v608
  %v625 = vadd.f32 %v477, %v609
  %v626 = vadd.f32 %v478, %v610
  %v627 = vadd.f32 %v479, %v611
  %v628 = vadd.f32 %v480, %v612
  %vm629 = vcmp.eq.s32.totalorder %v481, 1
  %vm630 = vcmp.eq.s32.totalorder %v482, 1
  %vm631 = vcmp.eq.s32.totalorder %v483, 1
  %vm632 = vcmp.eq.s32.totalorder %v484, 1
  %vm633 = vcmp.eq.s32.totalorder %v485, 1
  %vm634 = vcmp.eq.s32.totalorder %v486, 1
  %vm635 = vcmp.eq.s32.totalorder %v487, 1
  %vm636 = vcmp.eq.s32.totalorder %v488, 1
  %vm637 = vcmp.eq.s32.totalorder %v489, 1
  %vm638 = vcmp.eq.s32.totalorder %v490, 1
  %vm639 = vcmp.eq.s32.totalorder %v491, 1
  %vm640 = vcmp.eq.s32.totalorder %v492, 1
  %vm641 = vcmp.eq.s32.totalorder %v493, 1
  %vm642 = vcmp.eq.s32.totalorder %v494, 1
  %vm643 = vcmp.eq.s32.totalorder %v495, 1
  %vm644 = vcmp.eq.s32.totalorder %v496, 1
  %v645 = vsel %vm629, 1, 0
  %v646 = vsel %vm630, 1, 0
  %v647 = vsel %vm631, 1, 0
  %v648 = vsel %vm632, 1, 0
  %v649 = vsel %vm633, 1, 0
  %v650 = vsel %vm634, 1, 0
  %v651 = vsel %vm635, 1, 0
  %v652 = vsel %vm636, 1, 0
  %v653 = vsel %vm637, 1, 0
  %v654 = vsel %vm638, 1, 0
  %v655 = vsel %vm639, 1, 0
  %v656 = vsel %vm640, 1, 0
  %v657 = vsel %vm641, 1, 0
  %v658 = vsel %vm642, 1, 0
  %v659 = vsel %vm643, 1, 0
  %v660 = vsel %vm644, 1, 0
  %661 = vset.pattern.permute.xlu0 0
  %662 = vperm.xlu0 %661, %v645
  %v663 = vpop.permute.xlu0 %662
  %664 = vset.pattern.permute.xlu0 0
  %665 = vperm.xlu0 %664, %v646
  %v666 = vpop.permute.xlu0 %665
  %667 = vset.pattern.permute.xlu0 0
  %668 = vperm.xlu0 %667, %v647
  %v669 = vpop.permute.xlu0 %668
  %670 = vset.pattern.permute.xlu0 0
  %671 = vperm.xlu0 %670, %v648
  %v672 = vpop.permute.xlu0 %671
  %673 = vset.pattern.permute.xlu0 0
  %674 = vperm.xlu0 %673, %v649
  %v675 = vpop.permute.xlu0 %674
  %676 = vset.pattern.permute.xlu0 0
  %677 = vperm.xlu0 %676, %v650
  %v678 = vpop.permute.xlu0 %677
  %679 = vset.pattern.permute.xlu0 0
  %680 = vperm.xlu0 %679, %v651
  %v681 = vpop.permute.xlu0 %680
  %682 = vset.pattern.permute.xlu0 0
  %683 = vperm.xlu0 %682, %v652
  %v684 = vpop.permute.xlu0 %683
  %685 = vset.pattern.permute.xlu0 0
  %686 = vperm.xlu0 %685, %v653
  %v687 = vpop.permute.xlu0 %686
  %688 = vset.pattern.permute.xlu0 0
  %689 = vperm.xlu0 %688, %v654
  %v690 = vpop.permute.xlu0 %689
  %691 = vset.pattern.permute.xlu0 0
  %692 = vperm.xlu0 %691, %v655
  %v693 = vpop.permute.xlu0 %692
  %694 = vset.pattern.permute.xlu0 0
  %695 = vperm.xlu0 %694, %v656
  %v696 = vpop.permute.xlu0 %695
  %697 = vset.pattern.permute.xlu0 0
  %698 = vperm.xlu0 %697, %v657
  %v699 = vpop.permute.xlu0 %698
  %700 = vset.pattern.permute.xlu0 0
  %701 = vperm.xlu0 %700, %v658
  %v702 = vpop.permute.xlu0 %701
  %703 = vset.pattern.permute.xlu0 0
  %704 = vperm.xlu0 %703, %v659
  %v705 = vpop.permute.xlu0 %704
  %706 = vset.pattern.permute.xlu0 0
  %707 = vperm.xlu0 %706, %v660
  %v708 = vpop.permute.xlu0 %707
  %vm709 = vcmp.eq.s32.totalorder %v663, 1
  %vm710 = vcmp.eq.s32.totalorder %v666, 1
  %vm711 = vcmp.eq.s32.totalorder %v669, 1
  %vm712 = vcmp.eq.s32.totalorder %v672, 1
  %vm713 = vcmp.eq.s32.totalorder %v675, 1
  %vm714 = vcmp.eq.s32.totalorder %v678, 1
  %vm715 = vcmp.eq.s32.totalorder %v681, 1
  %vm716 = vcmp.eq.s32.totalorder %v684, 1
  %vm717 = vcmp.eq.s32.totalorder %v687, 1
  %vm718 = vcmp.eq.s32.totalorder %v690, 1
  %vm719 = vcmp.eq.s32.totalorder %v693, 1
  %vm720 = vcmp.eq.s32.totalorder %v696, 1
  %vm721 = vcmp.eq.s32.totalorder %v699, 1
  %vm722 = vcmp.eq.s32.totalorder %v702, 1
  %vm723 = vcmp.eq.s32.totalorder %v705, 1
  %vm724 = vcmp.eq.s32.totalorder %v708, 1
  %v725 = vlaneseq
  %v726 = vshrl.u32 %v725, 7
  %v727 = vsub.s32 5, %v726
  %v728 = vrot.slane %v64, %v727
  %v729 = vsel %vm709, %v728, 0.0
  %v730 = vsel %vm710, %v728, 0.0
  %v731 = vsel %vm711, %v728, 0.0
  %v732 = vsel %vm712, %v728, 0.0
  %v733 = vsel %vm713, %v728, 0.0
  %v734 = vsel %vm714, %v728, 0.0
  %v735 = vsel %vm715, %v728, 0.0
  %v736 = vsel %vm716, %v728, 0.0
  %v737 = vsel %vm717, %v728, 0.0
  %v738 = vsel %vm718, %v728, 0.0
  %v739 = vsel %vm719, %v728, 0.0
  %v740 = vsel %vm720, %v728, 0.0
  %v741 = vsel %vm721, %v728, 0.0
  %v742 = vsel %vm722, %v728, 0.0
  %v743 = vsel %vm723, %v728, 0.0
  %v744 = vsel %vm724, %v728, 0.0
  %v745 = vadd.f32 %v613, %v729
  %v746 = vadd.f32 %v614, %v730
  %v747 = vadd.f32 %v615, %v731
  %v748 = vadd.f32 %v616, %v732
  %v749 = vadd.f32 %v617, %v733
  %v750 = vadd.f32 %v618, %v734
  %v751 = vadd.f32 %v619, %v735
  %v752 = vadd.f32 %v620, %v736
  %v753 = vadd.f32 %v621, %v737
  %v754 = vadd.f32 %v622, %v738
  %v755 = vadd.f32 %v623, %v739
  %v756 = vadd.f32 %v624, %v740
  %v757 = vadd.f32 %v625, %v741
  %v758 = vadd.f32 %v626, %v742
  %v759 = vadd.f32 %v627, %v743
  %v760 = vadd.f32 %v628, %v744
  %vm761 = vcmp.eq.s32.totalorder %v481, 2
  %vm762 = vcmp.eq.s32.totalorder %v482, 2
  %vm763 = vcmp.eq.s32.totalorder %v483, 2
  %vm764 = vcmp.eq.s32.totalorder %v484, 2
  %vm765 = vcmp.eq.s32.totalorder %v485, 2
  %vm766 = vcmp.eq.s32.totalorder %v486, 2
  %vm767 = vcmp.eq.s32.totalorder %v487, 2
  %vm768 = vcmp.eq.s32.totalorder %v488, 2
  %vm769 = vcmp.eq.s32.totalorder %v489, 2
  %vm770 = vcmp.eq.s32.totalorder %v490, 2
  %vm771 = vcmp.eq.s32.totalorder %v491, 2
  %vm772 = vcmp.eq.s32.totalorder %v492, 2
  %vm773 = vcmp.eq.s32.totalorder %v493, 2
  %vm774 = vcmp.eq.s32.totalorder %v494, 2
  %vm775 = vcmp.eq.s32.totalorder %v495, 2
  %vm776 = vcmp.eq.s32.totalorder %v496, 2
  %v777 = vsel %vm761, 1, 0
  %v778 = vsel %vm762, 1, 0
  %v779 = vsel %vm763, 1, 0
  %v780 = vsel %vm764, 1, 0
  %v781 = vsel %vm765, 1, 0
  %v782 = vsel %vm766, 1, 0
  %v783 = vsel %vm767, 1, 0
  %v784 = vsel %vm768, 1, 0
  %v785 = vsel %vm769, 1, 0
  %v786 = vsel %vm770, 1, 0
  %v787 = vsel %vm771, 1, 0
  %v788 = vsel %vm772, 1, 0
  %v789 = vsel %vm773, 1, 0
  %v790 = vsel %vm774, 1, 0
  %v791 = vsel %vm775, 1, 0
  %v792 = vsel %vm776, 1, 0
  %793 = vset.pattern.permute.xlu0 0
  %794 = vperm.xlu0 %793, %v777
  %v795 = vpop.permute.xlu0 %794
  %796 = vset.pattern.permute.xlu0 0
  %797 = vperm.xlu0 %796, %v778
  %v798 = vpop.permute.xlu0 %797
  %799 = vset.pattern.permute.xlu0 0
  %800 = vperm.xlu0 %799, %v779
  %v801 = vpop.permute.xlu0 %800
  %802 = vset.pattern.permute.xlu0 0
  %803 = vperm.xlu0 %802, %v780
  %v804 = vpop.permute.xlu0 %803
  %805 = vset.pattern.permute.xlu0 0
  %806 = vperm.xlu0 %805, %v781
  %v807 = vpop.permute.xlu0 %806
  %808 = vset.pattern.permute.xlu0 0
  %809 = vperm.xlu0 %808, %v782
  %v810 = vpop.permute.xlu0 %809
  %811 = vset.pattern.permute.xlu0 0
  %812 = vperm.xlu0 %811, %v783
  %v813 = vpop.permute.xlu0 %812
  %814 = vset.pattern.permute.xlu0 0
  %815 = vperm.xlu0 %814, %v784
  %v816 = vpop.permute.xlu0 %815
  %817 = vset.pattern.permute.xlu0 0
  %818 = vperm.xlu0 %817, %v785
  %v819 = vpop.permute.xlu0 %818
  %820 = vset.pattern.permute.xlu0 0
  %821 = vperm.xlu0 %820, %v786
  %v822 = vpop.permute.xlu0 %821
  %823 = vset.pattern.permute.xlu0 0
  %824 = vperm.xlu0 %823, %v787
  %v825 = vpop.permute.xlu0 %824
  %826 = vset.pattern.permute.xlu0 0
  %827 = vperm.xlu0 %826, %v788
  %v828 = vpop.permute.xlu0 %827
  %829 = vset.pattern.permute.xlu0 0
  %830 = vperm.xlu0 %829, %v789
  %v831 = vpop.permute.xlu0 %830
  %832 = vset.pattern.permute.xlu0 0
  %833 = vperm.xlu0 %832, %v790
  %v834 = vpop.permute.xlu0 %833
  %835 = vset.pattern.permute.xlu0 0
  %836 = vperm.xlu0 %835, %v791
  %v837 = vpop.permute.xlu0 %836
  %838 = vset.pattern.permute.xlu0 0
  %839 = vperm.xlu0 %838, %v792
  %v840 = vpop.permute.xlu0 %839
  %vm841 = vcmp.eq.s32.totalorder %v795, 1
  %vm842 = vcmp.eq.s32.totalorder %v798, 1
  %vm843 = vcmp.eq.s32.totalorder %v801, 1
  %vm844 = vcmp.eq.s32.totalorder %v804, 1
  %vm845 = vcmp.eq.s32.totalorder %v807, 1
  %vm846 = vcmp.eq.s32.totalorder %v810, 1
  %vm847 = vcmp.eq.s32.totalorder %v813, 1
  %vm848 = vcmp.eq.s32.totalorder %v816, 1
  %vm849 = vcmp.eq.s32.totalorder %v819, 1
  %vm850 = vcmp.eq.s32.totalorder %v822, 1
  %vm851 = vcmp.eq.s32.totalorder %v825, 1
  %vm852 = vcmp.eq.s32.totalorder %v828, 1
  %vm853 = vcmp.eq.s32.totalorder %v831, 1
  %vm854 = vcmp.eq.s32.totalorder %v834, 1
  %vm855 = vcmp.eq.s32.totalorder %v837, 1
  %vm856 = vcmp.eq.s32.totalorder %v840, 1
  %v857 = vlaneseq
  %v858 = vshrl.u32 %v857, 7
  %v859 = vsub.s32 6, %v858
  %v860 = vrot.slane %v64, %v859
  %v861 = vsel %vm841, %v860, 0.0
  %v862 = vsel %vm842, %v860, 0.0
  %v863 = vsel %vm843, %v860, 0.0
  %v864 = vsel %vm844, %v860, 0.0
  %v865 = vsel %vm845, %v860, 0.0
  %v866 = vsel %vm846, %v860, 0.0
  %v867 = vsel %vm847, %v860, 0.0
  %v868 = vsel %vm848, %v860, 0.0
  %v869 = vsel %vm849, %v860, 0.0
  %v870 = vsel %vm850, %v860, 0.0
  %v871 = vsel %vm851, %v860, 0.0
  %v872 = vsel %vm852, %v860, 0.0
  %v873 = vsel %vm853, %v860, 0.0
  %v874 = vsel %vm854, %v860, 0.0
  %v875 = vsel %vm855, %v860, 0.0
  %v876 = vsel %vm856, %v860, 0.0
  %v877 = vadd.f32 %v745, %v861
  %v878 = vadd.f32 %v746, %v862
  %v879 = vadd.f32 %v747, %v863
  %v880 = vadd.f32 %v748, %v864
  %v881 = vadd.f32 %v749, %v865
  %v882 = vadd.f32 %v750, %v866
  %v883 = vadd.f32 %v751, %v867
  %v884 = vadd.f32 %v752, %v868
  %v885 = vadd.f32 %v753, %v869
  %v886 = vadd.f32 %v754, %v870
  %v887 = vadd.f32 %v755, %v871
  %v888 = vadd.f32 %v756, %v872
  %v889 = vadd.f32 %v757, %v873
  %v890 = vadd.f32 %v758, %v874
  %v891 = vadd.f32 %v759, %v875
  %v892 = vadd.f32 %v760, %v876
  %vm893 = vcmp.eq.s32.totalorder %v481, 3
  %vm894 = vcmp.eq.s32.totalorder %v482, 3
  %vm895 = vcmp.eq.s32.totalorder %v483, 3
  %vm896 = vcmp.eq.s32.totalorder %v484, 3
  %vm897 = vcmp.eq.s32.totalorder %v485, 3
  %vm898 = vcmp.eq.s32.totalorder %v486, 3
  %vm899 = vcmp.eq.s32.totalorder %v487, 3
  %vm900 = vcmp.eq.s32.totalorder %v488, 3
  %vm901 = vcmp.eq.s32.totalorder %v489, 3
  %vm902 = vcmp.eq.s32.totalorder %v490, 3
  %vm903 = vcmp.eq.s32.totalorder %v491, 3
  %vm904 = vcmp.eq.s32.totalorder %v492, 3
  %vm905 = vcmp.eq.s32.totalorder %v493, 3
  %vm906 = vcmp.eq.s32.totalorder %v494, 3
  %vm907 = vcmp.eq.s32.totalorder %v495, 3
  %vm908 = vcmp.eq.s32.totalorder %v496, 3
  %v909 = vsel %vm893, 1, 0
  %v910 = vsel %vm894, 1, 0
  %v911 = vsel %vm895, 1, 0
  %v912 = vsel %vm896, 1, 0
  %v913 = vsel %vm897, 1, 0
  %v914 = vsel %vm898, 1, 0
  %v915 = vsel %vm899, 1, 0
  %v916 = vsel %vm900, 1, 0
  %v917 = vsel %vm901, 1, 0
  %v918 = vsel %vm902, 1, 0
  %v919 = vsel %vm903, 1, 0
  %v920 = vsel %vm904, 1, 0
  %v921 = vsel %vm905, 1, 0
  %v922 = vsel %vm906, 1, 0
  %v923 = vsel %vm907, 1, 0
  %v924 = vsel %vm908, 1, 0
  %925 = vset.pattern.permute.xlu0 0
  %926 = vperm.xlu0 %925, %v909
  %v927 = vpop.permute.xlu0 %926
  %928 = vset.pattern.permute.xlu0 0
  %929 = vperm.xlu0 %928, %v910
  %v930 = vpop.permute.xlu0 %929
  %931 = vset.pattern.permute.xlu0 0
  %932 = vperm.xlu0 %931, %v911
  %v933 = vpop.permute.xlu0 %932
  %934 = vset.pattern.permute.xlu0 0
  %935 = vperm.xlu0 %934, %v912
  %v936 = vpop.permute.xlu0 %935
  %937 = vset.pattern.permute.xlu0 0
  %938 = vperm.xlu0 %937, %v913
  %v939 = vpop.permute.xlu0 %938
  %940 = vset.pattern.permute.xlu0 0
  %941 = vperm.xlu0 %940, %v914
  %v942 = vpop.permute.xlu0 %941
  %943 = vset.pattern.permute.xlu0 0
  %944 = vperm.xlu0 %943, %v915
  %v945 = vpop.permute.xlu0 %944
  %946 = vset.pattern.permute.xlu0 0
  %947 = vperm.xlu0 %946, %v916
  %v948 = vpop.permute.xlu0 %947
  %949 = vset.pattern.permute.xlu0 0
  %950 = vperm.xlu0 %949, %v917
  %v951 = vpop.permute.xlu0 %950
  %952 = vset.pattern.permute.xlu0 0
  %953 = vperm.xlu0 %952, %v918
  %v954 = vpop.permute.xlu0 %953
  %955 = vset.pattern.permute.xlu0 0
  %956 = vperm.xlu0 %955, %v919
  %v957 = vpop.permute.xlu0 %956
  %958 = vset.pattern.permute.xlu0 0
  %959 = vperm.xlu0 %958, %v920
  %v960 = vpop.permute.xlu0 %959
  %961 = vset.pattern.permute.xlu0 0
  %962 = vperm.xlu0 %961, %v921
  %v963 = vpop.permute.xlu0 %962
  %964 = vset.pattern.permute.xlu0 0
  %965 = vperm.xlu0 %964, %v922
  %v966 = vpop.permute.xlu0 %965
  %967 = vset.pattern.permute.xlu0 0
  %968 = vperm.xlu0 %967, %v923
  %v969 = vpop.permute.xlu0 %968
  %970 = vset.pattern.permute.xlu0 0
  %971 = vperm.xlu0 %970, %v924
  %v972 = vpop.permute.xlu0 %971
  %vm973 = vcmp.eq.s32.totalorder %v927, 1
  %vm974 = vcmp.eq.s32.totalorder %v930, 1
  %vm975 = vcmp.eq.s32.totalorder %v933, 1
  %vm976 = vcmp.eq.s32.totalorder %v936, 1
  %vm977 = vcmp.eq.s32.totalorder %v939, 1
  %vm978 = vcmp.eq.s32.totalorder %v942, 1
  %vm979 = vcmp.eq.s32.totalorder %v945, 1
  %vm980 = vcmp.eq.s32.totalorder %v948, 1
  %vm981 = vcmp.eq.s32.totalorder %v951, 1
  %vm982 = vcmp.eq.s32.totalorder %v954, 1
  %vm983 = vcmp.eq.s32.totalorder %v957, 1
  %vm984 = vcmp.eq.s32.totalorder %v960, 1
  %vm985 = vcmp.eq.s32.totalorder %v963, 1
  %vm986 = vcmp.eq.s32.totalorder %v966, 1
  %vm987 = vcmp.eq.s32.totalorder %v969, 1
  %vm988 = vcmp.eq.s32.totalorder %v972, 1
  %v989 = vlaneseq
  %v990 = vshrl.u32 %v989, 7
  %v991 = vsub.s32 7, %v990
  %v992 = vrot.slane %v64, %v991
  %v993 = vsel %vm973, %v992, 0.0
  %v994 = vsel %vm974, %v992, 0.0
  %v995 = vsel %vm975, %v992, 0.0
  %v996 = vsel %vm976, %v992, 0.0
  %v997 = vsel %vm977, %v992, 0.0
  %v998 = vsel %vm978, %v992, 0.0
  %v999 = vsel %vm979, %v992, 0.0
  %v1000 = vsel %vm980, %v992, 0.0
  %v1001 = vsel %vm981, %v992, 0.0
  %v1002 = vsel %vm982, %v992, 0.0
  %v1003 = vsel %vm983, %v992, 0.0
  %v1004 = vsel %vm984, %v992, 0.0
  %v1005 = vsel %vm985, %v992, 0.0
  %v1006 = vsel %vm986, %v992, 0.0
  %v1007 = vsel %vm987, %v992, 0.0
  %v1008 = vsel %vm988, %v992, 0.0
  %v1009 = vadd.f32 %v877, %v993
  %v1010 = vadd.f32 %v878, %v994
  %v1011 = vadd.f32 %v879, %v995
  %v1012 = vadd.f32 %v880, %v996
  %v1013 = vadd.f32 %v881, %v997
  %v1014 = vadd.f32 %v882, %v998
  %v1015 = vadd.f32 %v883, %v999
  %v1016 = vadd.f32 %v884, %v1000
  %v1017 = vadd.f32 %v885, %v1001
  %v1018 = vadd.f32 %v886, %v1002
  %v1019 = vadd.f32 %v887, %v1003
  %v1020 = vadd.f32 %v888, %v1004
  %v1021 = vadd.f32 %v889, %v1005
  %v1022 = vadd.f32 %v890, %v1006
  %v1023 = vadd.f32 %v891, %v1007
  %v1024 = vadd.f32 %v892, %v1008
  %vm1025 = vcmp.gt.f32.partialorder %v1009, 0.0
  %vm1026 = vcmp.gt.f32.partialorder %v1010, 0.0
  %vm1027 = vcmp.gt.f32.partialorder %v1011, 0.0
  %vm1028 = vcmp.gt.f32.partialorder %v1012, 0.0
  %vm1029 = vcmp.gt.f32.partialorder %v1013, 0.0
  %vm1030 = vcmp.gt.f32.partialorder %v1014, 0.0
  %vm1031 = vcmp.gt.f32.partialorder %v1015, 0.0
  %vm1032 = vcmp.gt.f32.partialorder %v1016, 0.0
  %vm1033 = vcmp.gt.f32.partialorder %v1017, 0.0
  %vm1034 = vcmp.gt.f32.partialorder %v1018, 0.0
  %vm1035 = vcmp.gt.f32.partialorder %v1019, 0.0
  %vm1036 = vcmp.gt.f32.partialorder %v1020, 0.0
  %vm1037 = vcmp.gt.f32.partialorder %v1021, 0.0
  %vm1038 = vcmp.gt.f32.partialorder %v1022, 0.0
  %vm1039 = vcmp.gt.f32.partialorder %v1023, 0.0
  %vm1040 = vcmp.gt.f32.partialorder %v1024, 0.0
  %v1041 = vmul.f32 %v1009, 0.2
  %v1042 = vmul.f32 %v1010, 0.2
  %v1043 = vmul.f32 %v1011, 0.2
  %v1044 = vmul.f32 %v1012, 0.2
  %v1045 = vmul.f32 %v1013, 0.2
  %v1046 = vmul.f32 %v1014, 0.2
  %v1047 = vmul.f32 %v1015, 0.2
  %v1048 = vmul.f32 %v1016, 0.2
  %v1049 = vmul.f32 %v1017, 0.2
  %v1050 = vmul.f32 %v1018, 0.2
  %v1051 = vmul.f32 %v1019, 0.2
  %v1052 = vmul.f32 %v1020, 0.2
  %v1053 = vmul.f32 %v1021, 0.2
  %v1054 = vmul.f32 %v1022, 0.2
  %v1055 = vmul.f32 %v1023, 0.2
  %v1056 = vmul.f32 %v1024, 0.2
  %v1057 = vsel %vm1025, %v1009, %v1041
  %v1058 = vsel %vm1026, %v1010, %v1042
  %v1059 = vsel %vm1027, %v1011, %v1043
  %v1060 = vsel %vm1028, %v1012, %v1044
  %v1061 = vsel %vm1029, %v1013, %v1045
  %v1062 = vsel %vm1030, %v1014, %v1046
  %v1063 = vsel %vm1031, %v1015, %v1047
  %v1064 = vsel %vm1032, %v1016, %v1048
  %v1065 = vsel %vm1033, %v1017, %v1049
  %v1066 = vsel %vm1034, %v1018, %v1050
  %v1067 = vsel %vm1035, %v1019, %v1051
  %v1068 = vsel %vm1036, %v1020, %v1052
  %v1069 = vsel %vm1037, %v1021, %v1053
  %v1070 = vsel %vm1038, %v1022, %v1054
  %v1071 = vsel %vm1039, %v1023, %v1055
  %v1072 = vsel %vm1040, %v1024, %v1056
  %v1073 = vld [vmem:[%s6] sm:$0x7]
  %v1074 = vpack.c.bf16 %v1058, %v1057
  %v1075 = vpack.c.bf16 %v1060, %v1059
  %v1076 = vpack.c.bf16 %v1062, %v1061
  %v1077 = vpack.c.bf16 %v1064, %v1063
  %v1078 = vpack.c.bf16 %v1066, %v1065
  %v1079 = vpack.c.bf16 %v1068, %v1067
  %v1080 = vpack.c.bf16 %v1070, %v1069
  %v1081 = vpack.c.bf16 %v1072, %v1071
  %v1082 = vld [vmem:[%s4] sm:$0xf]
  %v1083 = vld [vmem:[%s4 + $0x4] sm:$0xf]
  %v1084 = vld [vmem:[%s4 + $0x8] sm:$0xf]
  %v1085 = vld [vmem:[%s4 + $0xc] sm:$0xf]
  %v1086 = vld [vmem:[%s4 + $0x10] sm:$0xf]
  %v1087 = vld [vmem:[%s4 + $0x14] sm:$0xf]
  %v1088 = vld [vmem:[%s4 + $0x18] sm:$0xf]
  %v1089 = vld [vmem:[%s4 + $0x1c] sm:$0xf]
  %v1090 = vld [vmem:[%s4 + $0x20] sm:$0xf]
  %v1091 = vld [vmem:[%s4 + $0x24] sm:$0xf]
  %v1092 = vld [vmem:[%s4 + $0x28] sm:$0xf]
  %v1093 = vld [vmem:[%s4 + $0x2c] sm:$0xf]
  %v1094 = vld [vmem:[%s4 + $0x30] sm:$0xf]
  %v1095 = vld [vmem:[%s4 + $0x34] sm:$0xf]
  %v1096 = vld [vmem:[%s4 + $0x38] sm:$0xf]
  %v1097 = vld [vmem:[%s4 + $0x3c] sm:$0xf]
  %v1098 = vlaneseq
  %v1099 = vshrl.u32 %v1098, 7
  %v1100 = vsub.s32 0, %v1099
  %v1101 = vrot.slane %v1073, %v1100
  %v1118 = vunpack.c.l.b16 %v1082
  %v1119 = vunpack.c.l.b16 %v1083
  %v1120 = vunpack.c.l.b16 %v1084
  %v1121 = vunpack.c.l.b16 %v1085
  %v1122 = vunpack.c.l.b16 %v1086
  %v1123 = vunpack.c.l.b16 %v1087
  %v1124 = vunpack.c.l.b16 %v1088
  %v1125 = vunpack.c.l.b16 %v1089
  %v1126 = vunpack.c.l.b16 %v1090
  %v1127 = vunpack.c.l.b16 %v1091
  %v1128 = vunpack.c.l.b16 %v1092
  %v1129 = vunpack.c.l.b16 %v1093
  %v1130 = vunpack.c.l.b16 %v1094
  %v1131 = vunpack.c.l.b16 %v1095
  %v1132 = vunpack.c.l.b16 %v1096
  %v1133 = vunpack.c.l.b16 %v1097
  %v1134 = vpack.c.b16 %v1119, %v1118
  %v1135 = vpack.c.b16 %v1121, %v1120
  %v1136 = vpack.c.b16 %v1123, %v1122
  %v1137 = vpack.c.b16 %v1125, %v1124
  %v1138 = vpack.c.b16 %v1127, %v1126
  %v1139 = vpack.c.b16 %v1129, %v1128
  %v1140 = vpack.c.b16 %v1131, %v1130
  %v1141 = vpack.c.b16 %v1133, %v1132
  %1150 = vmatprep.subr.bf16.mxu0 0
  %1151 = vmatpush1.bf16.msra.mxu0 %v1134
  %1152 = vmatprep.subr.bf16.mxu0 0
  %1153 = vmatpush1.bf16.msra.mxu0 %v1135
  %1154 = vmatprep.subr.bf16.mxu0 0
  %1155 = vmatpush1.bf16.msra.mxu0 %v1136
  %1156 = vmatprep.subr.bf16.mxu0 0
  %1157 = vmatpush1.bf16.msra.mxu0 %v1137
  %1158 = vmatprep.subr.bf16.mxu0 0
  %1159 = vmatpush1.bf16.msra.mxu0 %v1138
  %1160 = vmatprep.subr.bf16.mxu0 0
  %1161 = vmatpush1.bf16.msra.mxu0 %v1139
  %1162 = vmatprep.subr.bf16.mxu0 0
  %1163 = vmatpush1.bf16.msra.mxu0 %v1140
  %1164 = vmatprep.subr.bf16.mxu0 0
  %1165 = vmatpush1.bf16.msra.mxu0 %v1141
  %1166 = vmatprep.subr.bf16.mxu0 0
  %1167 = vmatpush1.bf16.msra.mxu0 0
  %1168 = vmatprep.subr.bf16.mxu0 0
  %1169 = vmatpush1.bf16.msra.mxu0 0
  %1170 = vmatprep.subr.bf16.mxu0 0
  %1171 = vmatpush1.bf16.msra.mxu0 0
  %1172 = vmatprep.subr.bf16.mxu0 0
  %1173 = vmatpush1.bf16.msra.mxu0 0
  %1174 = vmatprep.subr.bf16.mxu0 0
  %1175 = vmatpush1.bf16.msra.mxu0 0
  %1176 = vmatprep.subr.bf16.mxu0 0
  %1177 = vmatpush1.bf16.msra.mxu0 0
  %1178 = vmatprep.subr.bf16.mxu0 0
  %1179 = vmatpush1.bf16.msra.mxu0 0
  %1180 = vmatprep.subr.bf16.mxu0 0
  %1181 = vmatpush1.bf16.msra.mxu0 0
  %1182 = vmatprep.mubr.bf16.mxu0 0
  %1183 = vmatmul.mubr.bf16.gmra.mrb[0].mxu0 %v1074
  %v1184 = vpop.f32.mrb[0].mxu0
  %v1185 = vadd.f32 %v1101, %v1184
  %v1186 = vpop.f32.mrb[0].mxu0
  %v1187 = vpop.f32.mrb[0].mxu0
  %v1188 = vadd.f32 %v1101, %v1187
  %v1189 = vpop.f32.mrb[0].mxu0
  %1190 = vmatprep.mubr.bf16.mxu0 0
  %1191 = vmatmul.mubr.bf16.gmra.mrb[0].mxu0 %v1075
  %v1192 = vpop.f32.mrb[0].mxu0
  %v1193 = vadd.f32 %v1101, %v1192
  %v1194 = vpop.f32.mrb[0].mxu0
  %v1195 = vpop.f32.mrb[0].mxu0
  %v1196 = vadd.f32 %v1101, %v1195
  %v1197 = vpop.f32.mrb[0].mxu0
  %1198 = vmatprep.mubr.bf16.mxu0 0
  %1199 = vmatmul.mubr.bf16.gmra.mrb[0].mxu0 %v1076
  %v1200 = vpop.f32.mrb[0].mxu0
  %v1201 = vadd.f32 %v1101, %v1200
  %v1202 = vpop.f32.mrb[0].mxu0
  %v1203 = vpop.f32.mrb[0].mxu0
  %v1204 = vadd.f32 %v1101, %v1203
  %v1205 = vpop.f32.mrb[0].mxu0
  %1206 = vmatprep.mubr.bf16.mxu0 0
  %1207 = vmatmul.mubr.bf16.gmra.mrb[0].mxu0 %v1077
  %v1208 = vpop.f32.mrb[0].mxu0
  %v1209 = vadd.f32 %v1101, %v1208
  %v1210 = vpop.f32.mrb[0].mxu0
  %v1211 = vpop.f32.mrb[0].mxu0
  %v1212 = vadd.f32 %v1101, %v1211
  %v1213 = vpop.f32.mrb[0].mxu0
  %1214 = vmatprep.mubr.bf16.mxu0 0
  %1215 = vmatmul.mubr.bf16.gmra.mrb[0].mxu0 %v1078
  %v1216 = vpop.f32.mrb[0].mxu0
  %v1217 = vadd.f32 %v1101, %v1216
  %v1218 = vpop.f32.mrb[0].mxu0
  %v1219 = vpop.f32.mrb[0].mxu0
  %v1220 = vadd.f32 %v1101, %v1219
  %v1221 = vpop.f32.mrb[0].mxu0
  %1222 = vmatprep.mubr.bf16.mxu0 0
  %1223 = vmatmul.mubr.bf16.gmra.mrb[0].mxu0 %v1079
  %v1224 = vpop.f32.mrb[0].mxu0
  %v1225 = vadd.f32 %v1101, %v1224
  %v1226 = vpop.f32.mrb[0].mxu0
  %v1227 = vpop.f32.mrb[0].mxu0
  %v1228 = vadd.f32 %v1101, %v1227
  %v1229 = vpop.f32.mrb[0].mxu0
  %1230 = vmatprep.mubr.bf16.mxu0 0
  %1231 = vmatmul.mubr.bf16.gmra.mrb[0].mxu0 %v1080
  %v1232 = vpop.f32.mrb[0].mxu0
  %v1233 = vadd.f32 %v1101, %v1232
  %v1234 = vpop.f32.mrb[0].mxu0
  %v1235 = vpop.f32.mrb[0].mxu0
  %v1236 = vadd.f32 %v1101, %v1235
  %v1237 = vpop.f32.mrb[0].mxu0
  %1238 = vmatprep.mubr.bf16.mxu0 0
  %1239 = vmatmul.mubr.bf16.gmra.mrb[0].mxu0 %v1081
  %v1240 = vpop.f32.mrb[0].mxu0
  %v1241 = vadd.f32 %v1101, %v1240
  %v1242 = vpop.f32.mrb[0].mxu0
  %v1243 = vpop.f32.mrb[0].mxu0
  %v1244 = vadd.f32 %v1101, %v1243
  %v1245 = vpop.f32.mrb[0].mxu0
  %1246 = vdwg.mxu0
  %vm1247 = vcmp.gt.f32.partialorder %v1185, 0.0
  %vm1248 = vcmp.gt.f32.partialorder %v1188, 0.0
  %vm1249 = vcmp.gt.f32.partialorder %v1193, 0.0
  %vm1250 = vcmp.gt.f32.partialorder %v1196, 0.0
  %vm1251 = vcmp.gt.f32.partialorder %v1201, 0.0
  %vm1252 = vcmp.gt.f32.partialorder %v1204, 0.0
  %vm1253 = vcmp.gt.f32.partialorder %v1209, 0.0
  %vm1254 = vcmp.gt.f32.partialorder %v1212, 0.0
  %vm1255 = vcmp.gt.f32.partialorder %v1217, 0.0
  %vm1256 = vcmp.gt.f32.partialorder %v1220, 0.0
  %vm1257 = vcmp.gt.f32.partialorder %v1225, 0.0
  %vm1258 = vcmp.gt.f32.partialorder %v1228, 0.0
  %vm1259 = vcmp.gt.f32.partialorder %v1233, 0.0
  %vm1260 = vcmp.gt.f32.partialorder %v1236, 0.0
  %vm1261 = vcmp.gt.f32.partialorder %v1241, 0.0
  %vm1262 = vcmp.gt.f32.partialorder %v1244, 0.0
  %v1263 = vmul.f32 %v1185, 0.2
  %v1264 = vmul.f32 %v1188, 0.2
  %v1265 = vmul.f32 %v1193, 0.2
  %v1266 = vmul.f32 %v1196, 0.2
  %v1267 = vmul.f32 %v1201, 0.2
  %v1268 = vmul.f32 %v1204, 0.2
  %v1269 = vmul.f32 %v1209, 0.2
  %v1270 = vmul.f32 %v1212, 0.2
  %v1271 = vmul.f32 %v1217, 0.2
  %v1272 = vmul.f32 %v1220, 0.2
  %v1273 = vmul.f32 %v1225, 0.2
  %v1274 = vmul.f32 %v1228, 0.2
  %v1275 = vmul.f32 %v1233, 0.2
  %v1276 = vmul.f32 %v1236, 0.2
  %v1277 = vmul.f32 %v1241, 0.2
  %v1278 = vmul.f32 %v1244, 0.2
  %v1279 = vsel %vm1247, %v1185, %v1263
  %v1280 = vsel %vm1248, %v1188, %v1264
  %v1281 = vsel %vm1249, %v1193, %v1265
  %v1282 = vsel %vm1250, %v1196, %v1266
  %v1283 = vsel %vm1251, %v1201, %v1267
  %v1284 = vsel %vm1252, %v1204, %v1268
  %v1285 = vsel %vm1253, %v1209, %v1269
  %v1286 = vsel %vm1254, %v1212, %v1270
  %v1287 = vsel %vm1255, %v1217, %v1271
  %v1288 = vsel %vm1256, %v1220, %v1272
  %v1289 = vsel %vm1257, %v1225, %v1273
  %v1290 = vsel %vm1258, %v1228, %v1274
  %v1291 = vsel %vm1259, %v1233, %v1275
  %v1292 = vsel %vm1260, %v1236, %v1276
  %v1293 = vsel %vm1261, %v1241, %v1277
  %v1294 = vsel %vm1262, %v1244, %v1278
  %v1295 = vpack.c.bf16 %v1280, %v1279
  %v1296 = vpack.c.bf16 %v1282, %v1281
  %v1297 = vpack.c.bf16 %v1284, %v1283
  %v1298 = vpack.c.bf16 %v1286, %v1285
  %v1299 = vpack.c.bf16 %v1288, %v1287
  %v1300 = vpack.c.bf16 %v1290, %v1289
  %v1301 = vpack.c.bf16 %v1292, %v1291
  %v1302 = vpack.c.bf16 %v1294, %v1293
  %v1303 = vld [vmem:[%s5] sm:$0xf]
  %v1304 = vld [vmem:[%s5 + $0x4] sm:$0xf]
  %v1305 = vld [vmem:[%s5 + $0x8] sm:$0xf]
  %v1306 = vld [vmem:[%s5 + $0xc] sm:$0xf]
  %v1307 = vld [vmem:[%s5 + $0x10] sm:$0xf]
  %v1308 = vld [vmem:[%s5 + $0x14] sm:$0xf]
  %v1309 = vld [vmem:[%s5 + $0x18] sm:$0xf]
  %v1310 = vld [vmem:[%s5 + $0x1c] sm:$0xf]
  %v1311 = vld [vmem:[%s5 + $0x20] sm:$0xf]
  %v1312 = vld [vmem:[%s5 + $0x24] sm:$0xf]
  %v1313 = vld [vmem:[%s5 + $0x28] sm:$0xf]
  %v1314 = vld [vmem:[%s5 + $0x2c] sm:$0xf]
  %v1315 = vld [vmem:[%s5 + $0x30] sm:$0xf]
  %v1316 = vld [vmem:[%s5 + $0x34] sm:$0xf]
  %v1317 = vld [vmem:[%s5 + $0x38] sm:$0xf]
  %v1318 = vld [vmem:[%s5 + $0x3c] sm:$0xf]
  %v1319 = vlaneseq
  %v1320 = vshrl.u32 %v1319, 7
  %v1321 = vsub.s32 1, %v1320
  %v1322 = vrot.slane %v1073, %v1321
  %v1339 = vunpack.c.l.b16 %v1303
  %v1340 = vunpack.c.l.b16 %v1304
  %v1341 = vunpack.c.l.b16 %v1305
  %v1342 = vunpack.c.l.b16 %v1306
  %v1343 = vunpack.c.l.b16 %v1307
  %v1344 = vunpack.c.l.b16 %v1308
  %v1345 = vunpack.c.l.b16 %v1309
  %v1346 = vunpack.c.l.b16 %v1310
  %v1347 = vunpack.c.l.b16 %v1311
  %v1348 = vunpack.c.l.b16 %v1312
  %v1349 = vunpack.c.l.b16 %v1313
  %v1350 = vunpack.c.l.b16 %v1314
  %v1351 = vunpack.c.l.b16 %v1315
  %v1352 = vunpack.c.l.b16 %v1316
  %v1353 = vunpack.c.l.b16 %v1317
  %v1354 = vunpack.c.l.b16 %v1318
  %v1355 = vpack.c.b16 %v1340, %v1339
  %v1356 = vpack.c.b16 %v1342, %v1341
  %v1357 = vpack.c.b16 %v1344, %v1343
  %v1358 = vpack.c.b16 %v1346, %v1345
  %v1359 = vpack.c.b16 %v1348, %v1347
  %v1360 = vpack.c.b16 %v1350, %v1349
  %v1361 = vpack.c.b16 %v1352, %v1351
  %v1362 = vpack.c.b16 %v1354, %v1353
  %1371 = vmatprep.subr.bf16.mxu0 0
  %1372 = vmatpush1.bf16.msra.mxu0 %v1355
  %1373 = vmatprep.subr.bf16.mxu0 0
  %1374 = vmatpush1.bf16.msra.mxu0 %v1356
  %1375 = vmatprep.subr.bf16.mxu0 0
  %1376 = vmatpush1.bf16.msra.mxu0 %v1357
  %1377 = vmatprep.subr.bf16.mxu0 0
  %1378 = vmatpush1.bf16.msra.mxu0 %v1358
  %1379 = vmatprep.subr.bf16.mxu0 0
  %1380 = vmatpush1.bf16.msra.mxu0 %v1359
  %1381 = vmatprep.subr.bf16.mxu0 0
  %1382 = vmatpush1.bf16.msra.mxu0 %v1360
  %1383 = vmatprep.subr.bf16.mxu0 0
  %1384 = vmatpush1.bf16.msra.mxu0 %v1361
  %1385 = vmatprep.subr.bf16.mxu0 0
  %1386 = vmatpush1.bf16.msra.mxu0 %v1362
  %1387 = vmatprep.subr.bf16.mxu0 0
  %1388 = vmatpush1.bf16.msra.mxu0 0
  %1389 = vmatprep.subr.bf16.mxu0 0
  %1390 = vmatpush1.bf16.msra.mxu0 0
  %1391 = vmatprep.subr.bf16.mxu0 0
  %1392 = vmatpush1.bf16.msra.mxu0 0
  %1393 = vmatprep.subr.bf16.mxu0 0
  %1394 = vmatpush1.bf16.msra.mxu0 0
  %1395 = vmatprep.subr.bf16.mxu0 0
  %1396 = vmatpush1.bf16.msra.mxu0 0
  %1397 = vmatprep.subr.bf16.mxu0 0
  %1398 = vmatpush1.bf16.msra.mxu0 0
  %1399 = vmatprep.subr.bf16.mxu0 0
  %1400 = vmatpush1.bf16.msra.mxu0 0
  %1401 = vmatprep.subr.bf16.mxu0 0
  %1402 = vmatpush1.bf16.msra.mxu0 0
  %1403 = vmatprep.mubr.bf16.mxu0 0
  %1404 = vmatmul.mubr.bf16.gmra.mrb[0].mxu0 %v1295
  %v1405 = vpop.f32.mrb[0].mxu0
  %v1406 = vadd.f32 %v1322, %v1405
  %v1407 = vpop.f32.mrb[0].mxu0
  %v1408 = vpop.f32.mrb[0].mxu0
  %v1409 = vadd.f32 %v1322, %v1408
  %v1410 = vpop.f32.mrb[0].mxu0
  %1411 = vmatprep.mubr.bf16.mxu0 0
  %1412 = vmatmul.mubr.bf16.gmra.mrb[0].mxu0 %v1296
  %v1413 = vpop.f32.mrb[0].mxu0
  %v1414 = vadd.f32 %v1322, %v1413
  %v1415 = vpop.f32.mrb[0].mxu0
  %v1416 = vpop.f32.mrb[0].mxu0
  %v1417 = vadd.f32 %v1322, %v1416
  %v1418 = vpop.f32.mrb[0].mxu0
  %1419 = vmatprep.mubr.bf16.mxu0 0
  %1420 = vmatmul.mubr.bf16.gmra.mrb[0].mxu0 %v1297
  %v1421 = vpop.f32.mrb[0].mxu0
  %v1422 = vadd.f32 %v1322, %v1421
  %v1423 = vpop.f32.mrb[0].mxu0
  %v1424 = vpop.f32.mrb[0].mxu0
  %v1425 = vadd.f32 %v1322, %v1424
  %v1426 = vpop.f32.mrb[0].mxu0
  %1427 = vmatprep.mubr.bf16.mxu0 0
  %1428 = vmatmul.mubr.bf16.gmra.mrb[0].mxu0 %v1298
  %v1429 = vpop.f32.mrb[0].mxu0
  %v1430 = vadd.f32 %v1322, %v1429
  %v1431 = vpop.f32.mrb[0].mxu0
  %v1432 = vpop.f32.mrb[0].mxu0
  %v1433 = vadd.f32 %v1322, %v1432
  %v1434 = vpop.f32.mrb[0].mxu0
  %1435 = vmatprep.mubr.bf16.mxu0 0
  %1436 = vmatmul.mubr.bf16.gmra.mrb[0].mxu0 %v1299
  %v1437 = vpop.f32.mrb[0].mxu0
  %v1438 = vadd.f32 %v1322, %v1437
  %v1439 = vpop.f32.mrb[0].mxu0
  %v1440 = vpop.f32.mrb[0].mxu0
  %v1441 = vadd.f32 %v1322, %v1440
  %v1442 = vpop.f32.mrb[0].mxu0
  %1443 = vmatprep.mubr.bf16.mxu0 0
  %1444 = vmatmul.mubr.bf16.gmra.mrb[0].mxu0 %v1300
  %v1445 = vpop.f32.mrb[0].mxu0
  %v1446 = vadd.f32 %v1322, %v1445
  %v1447 = vpop.f32.mrb[0].mxu0
  %v1448 = vpop.f32.mrb[0].mxu0
  %v1449 = vadd.f32 %v1322, %v1448
  %v1450 = vpop.f32.mrb[0].mxu0
  %1451 = vmatprep.mubr.bf16.mxu0 0
  %1452 = vmatmul.mubr.bf16.gmra.mrb[0].mxu0 %v1301
  %v1453 = vpop.f32.mrb[0].mxu0
  %v1454 = vadd.f32 %v1322, %v1453
  %v1455 = vpop.f32.mrb[0].mxu0
  %v1456 = vpop.f32.mrb[0].mxu0
  %v1457 = vadd.f32 %v1322, %v1456
  %v1458 = vpop.f32.mrb[0].mxu0
  %1459 = vmatprep.mubr.bf16.mxu0 0
  %1460 = vmatmul.mubr.bf16.gmra.mrb[0].mxu0 %v1302
  %v1461 = vpop.f32.mrb[0].mxu0
  %v1462 = vadd.f32 %v1322, %v1461
  %v1463 = vpop.f32.mrb[0].mxu0
  %v1464 = vpop.f32.mrb[0].mxu0
  %v1465 = vadd.f32 %v1322, %v1464
  %v1466 = vpop.f32.mrb[0].mxu0
  %1467 = vdwg.mxu0
  %vm1468 = vcmp.gt.f32.partialorder %v1406, 0.0
  %vm1469 = vcmp.gt.f32.partialorder %v1409, 0.0
  %vm1470 = vcmp.gt.f32.partialorder %v1414, 0.0
  %vm1471 = vcmp.gt.f32.partialorder %v1417, 0.0
  %vm1472 = vcmp.gt.f32.partialorder %v1422, 0.0
  %vm1473 = vcmp.gt.f32.partialorder %v1425, 0.0
  %vm1474 = vcmp.gt.f32.partialorder %v1430, 0.0
  %vm1475 = vcmp.gt.f32.partialorder %v1433, 0.0
  %vm1476 = vcmp.gt.f32.partialorder %v1438, 0.0
  %vm1477 = vcmp.gt.f32.partialorder %v1441, 0.0
  %vm1478 = vcmp.gt.f32.partialorder %v1446, 0.0
  %vm1479 = vcmp.gt.f32.partialorder %v1449, 0.0
  %vm1480 = vcmp.gt.f32.partialorder %v1454, 0.0
  %vm1481 = vcmp.gt.f32.partialorder %v1457, 0.0
  %vm1482 = vcmp.gt.f32.partialorder %v1462, 0.0
  %vm1483 = vcmp.gt.f32.partialorder %v1465, 0.0
  %v1484 = vmul.f32 %v1406, 0.2
  %v1485 = vmul.f32 %v1409, 0.2
  %v1486 = vmul.f32 %v1414, 0.2
  %v1487 = vmul.f32 %v1417, 0.2
  %v1488 = vmul.f32 %v1422, 0.2
  %v1489 = vmul.f32 %v1425, 0.2
  %v1490 = vmul.f32 %v1430, 0.2
  %v1491 = vmul.f32 %v1433, 0.2
  %v1492 = vmul.f32 %v1438, 0.2
  %v1493 = vmul.f32 %v1441, 0.2
  %v1494 = vmul.f32 %v1446, 0.2
  %v1495 = vmul.f32 %v1449, 0.2
  %v1496 = vmul.f32 %v1454, 0.2
  %v1497 = vmul.f32 %v1457, 0.2
  %v1498 = vmul.f32 %v1462, 0.2
  %v1499 = vmul.f32 %v1465, 0.2
  %v1500 = vsel %vm1468, %v1406, %v1484
  %v1501 = vsel %vm1469, %v1409, %v1485
  %v1502 = vsel %vm1470, %v1414, %v1486
  %v1503 = vsel %vm1471, %v1417, %v1487
  %v1504 = vsel %vm1472, %v1422, %v1488
  %v1505 = vsel %vm1473, %v1425, %v1489
  %v1506 = vsel %vm1474, %v1430, %v1490
  %v1507 = vsel %vm1475, %v1433, %v1491
  %v1508 = vsel %vm1476, %v1438, %v1492
  %v1509 = vsel %vm1477, %v1441, %v1493
  %v1510 = vsel %vm1478, %v1446, %v1494
  %v1511 = vsel %vm1479, %v1449, %v1495
  %v1512 = vsel %vm1480, %v1454, %v1496
  %v1513 = vsel %vm1481, %v1457, %v1497
  %v1514 = vsel %vm1482, %v1462, %v1498
  %v1515 = vsel %vm1483, %v1465, %v1499
  %v1516 = vlaneseq
  %v1517 = vshrl.u32 %v1516, 7
  %v1518 = vsub.s32 2, %v1517
  %v1519 = vrot.slane %v1073, %v1518
  %v1520 = vmul.f32 %v1500, %v1519
  %v1521 = vmul.f32 %v1501, %v1519
  %v1522 = vmul.f32 %v1502, %v1519
  %v1523 = vmul.f32 %v1503, %v1519
  %v1524 = vmul.f32 %v1504, %v1519
  %v1525 = vmul.f32 %v1505, %v1519
  %v1526 = vmul.f32 %v1506, %v1519
  %v1527 = vmul.f32 %v1507, %v1519
  %v1528 = vmul.f32 %v1508, %v1519
  %v1529 = vmul.f32 %v1509, %v1519
  %v1530 = vmul.f32 %v1510, %v1519
  %v1531 = vmul.f32 %v1511, %v1519
  %v1532 = vmul.f32 %v1512, %v1519
  %v1533 = vmul.f32 %v1513, %v1519
  %v1534 = vmul.f32 %v1514, %v1519
  %v1535 = vmul.f32 %v1515, %v1519
  %1536 = vadd.xlane.f32.xlu0 %v1520
  %v1537 = vpop.xlane.xlu0 %1536
  %1538 = vadd.xlane.f32.xlu0 %v1521
  %v1539 = vpop.xlane.xlu0 %1538
  %1540 = vadd.xlane.f32.xlu0 %v1522
  %v1541 = vpop.xlane.xlu0 %1540
  %1542 = vadd.xlane.f32.xlu0 %v1523
  %v1543 = vpop.xlane.xlu0 %1542
  %1544 = vadd.xlane.f32.xlu0 %v1524
  %v1545 = vpop.xlane.xlu0 %1544
  %1546 = vadd.xlane.f32.xlu0 %v1525
  %v1547 = vpop.xlane.xlu0 %1546
  %1548 = vadd.xlane.f32.xlu0 %v1526
  %v1549 = vpop.xlane.xlu0 %1548
  %1550 = vadd.xlane.f32.xlu0 %v1527
  %v1551 = vpop.xlane.xlu0 %1550
  %1552 = vadd.xlane.f32.xlu0 %v1528
  %v1553 = vpop.xlane.xlu0 %1552
  %1554 = vadd.xlane.f32.xlu0 %v1529
  %v1555 = vpop.xlane.xlu0 %1554
  %1556 = vadd.xlane.f32.xlu0 %v1530
  %v1557 = vpop.xlane.xlu0 %1556
  %1558 = vadd.xlane.f32.xlu0 %v1531
  %v1559 = vpop.xlane.xlu0 %1558
  %1560 = vadd.xlane.f32.xlu0 %v1532
  %v1561 = vpop.xlane.xlu0 %1560
  %1562 = vadd.xlane.f32.xlu0 %v1533
  %v1563 = vpop.xlane.xlu0 %1562
  %1564 = vadd.xlane.f32.xlu0 %v1534
  %v1565 = vpop.xlane.xlu0 %1564
  %1566 = vadd.xlane.f32.xlu0 %v1535
  %v1567 = vpop.xlane.xlu0 %1566
  %v1568 = vld [vmem:[#allocation2] sm:$0x1]
  %v1570 = vlaneseq
  %v1571 = vshrl.u32 %v1570, 7
  %v1572 = vsub.s32 0, %v1571
  %v1573 = vrot.slane %v1568, %v1572
  %v1575 = vadd.f32 %v1537, %v1573
  %v1576 = vadd.f32 %v1539, %v1573
  %v1577 = vadd.f32 %v1541, %v1573
  %v1578 = vadd.f32 %v1543, %v1573
  %v1579 = vadd.f32 %v1545, %v1573
  %v1580 = vadd.f32 %v1547, %v1573
  %v1581 = vadd.f32 %v1549, %v1573
  %v1582 = vadd.f32 %v1551, %v1573
  %v1583 = vadd.f32 %v1553, %v1573
  %v1584 = vadd.f32 %v1555, %v1573
  %v1585 = vadd.f32 %v1557, %v1573
  %v1586 = vadd.f32 %v1559, %v1573
  %v1587 = vadd.f32 %v1561, %v1573
  %v1588 = vadd.f32 %v1563, %v1573
  %v1589 = vadd.f32 %v1565, %v1573
  %v1590 = vadd.f32 %v1567, %v1573
  %vm1591 = vcmask 7168
  %1592 = vst.msk [vmem:[%s8] sm:$0xff] %vm1591, %v1575
  %1593 = vst.msk [vmem:[%s8 + $0x8] sm:$0xff] %vm1591, %v1576
  %1594 = vst.msk [vmem:[%s8 + $0x10] sm:$0xff] %vm1591, %v1577
  %1595 = vst.msk [vmem:[%s8 + $0x18] sm:$0xff] %vm1591, %v1578
  %1596 = vst.msk [vmem:[%s8 + $0x20] sm:$0xff] %vm1591, %v1579
  %1597 = vst.msk [vmem:[%s8 + $0x28] sm:$0xff] %vm1591, %v1580
  %1598 = vst.msk [vmem:[%s8 + $0x30] sm:$0xff] %vm1591, %v1581
  %1599 = vst.msk [vmem:[%s8 + $0x38] sm:$0xff] %vm1591, %v1582
  %1600 = vst.msk [vmem:[%s8 + $0x40] sm:$0xff] %vm1591, %v1583
  %1601 = vst.msk [vmem:[%s8 + $0x48] sm:$0xff] %vm1591, %v1584
  %1602 = vst.msk [vmem:[%s8 + $0x50] sm:$0xff] %vm1591, %v1585
  %1603 = vst.msk [vmem:[%s8 + $0x58] sm:$0xff] %vm1591, %v1586
  %1604 = vst.msk [vmem:[%s8 + $0x60] sm:$0xff] %vm1591, %v1587
  %1605 = vst.msk [vmem:[%s8 + $0x68] sm:$0xff] %vm1591, %v1588
  %1606 = vst.msk [vmem:[%s8 + $0x70] sm:$0xff] %vm1591, %v1589
  %1607 = vst.msk [vmem:[%s8 + $0x78] sm:$0xff] %vm1591, %v1590
  // Predicated region
  $region34: #{discriminator_forward.1} parent=0 // pred_check
    _
  $region35: #{discriminator_forward.1} parent=0 // pred_check_branch
    %1609 = sbr.rel (0) target = $region37
  $region36: #{discriminator_forward.1} parent=0 // pred_region
    _
  $region37: #{discriminator_forward.1} parent=0 // pred_fallthru
    _
  // Predicated region
  $region38: #{discriminator_forward.1} parent=0 // pred_check
    _
  $region39: #{discriminator_forward.1} parent=0 // pred_check_branch
    %1611 = sbr.rel (0) target = $region41
  $region40: #{discriminator_forward.1} parent=0 // pred_region
    _
  $region41: #{discriminator_forward.1} parent=0 // pred_fallthru
    _

</llo_original>
